<compile_context>
chip_gen: v5e
topology: v5e:2x2
jax: 0.10.0
libtpu: 0.0.40
codegen_flags: <defaults>
</compile_context>

<pallas_src>
import functools

import jax
import jax.numpy as jnp
from jax.experimental import pallas as pl
from jax.experimental.pallas import tpu as pltpu

GROUPS = 4          # MultiHead_Covar_Attn.group
SQRTM_ITERS = 5     # MPNCOV.SqrtmLayer(cov_mat, 5)
IN_EPS = 1e-3       # nn.InstanceNorm2d(..., eps=0.001)
BN_EPS = 1e-5       # nn.BatchNorm2d default eps
GN_EPS = 1e-5       # nn.GroupNorm default eps
TR_EPS = 1e-12      # guard for a = cov / trace on near-zero-variance groups


# ----------------------------- helpers --------------------------------------

def _eye(n, dtype=jnp.float32):
    ii = jax.lax.broadcasted_iota(jnp.int32, (n, n), 0)
    jj = jax.lax.broadcasted_iota(jnp.int32, (n, n), 1)
    return (ii == jj).astype(dtype)


def _group_mask(c):
    """[C, C] block-diagonal mask: 1 where channels i and j share a group."""
    gid = jnp.arange(c) // (c // GROUPS)
    return (gid[:, None] == gid[None, :]).astype(jnp.float32)


def _pick_block_b(batch, cap=8):
    """Samples per stage-1 grid step: amortize per-step pipeline overhead while
    keeping >= 2 grid steps so both v7x TensorCores get work."""
    if batch <= 1:
        return 1
    best = 1
    for bb in range(1, min(batch // 2, cap) + 1):
        if batch % bb == 0:
            best = bb
    return best


# --------------------- stage 1: linear + Covar_Attn + GN --------------------
# Block of Bb samples per grid step; per-sample / per-group statistics only.

def _stage1_kernel(x_ref, wlin_ref, mask_ref, gnw_ref, gnb_ref, out_ref, *, npts):
    C, total = x_ref.shape
    bb = total // npts
    Cg = C // GROUPS
    inv_n = 1.0 / npts
    inv_cg = 1.0 / Cg
    inv_gcnt = 1.0 / (Cg * npts)

    x_all = x_ref[...].astype(jnp.float32)                    # [C, Bb*N]
    w = wlin_ref[...].astype(jnp.float32)
    mask = mask_ref[...]                                       # [C, C] group mask
    gnw = gnw_ref[...]
    gnb = gnb_ref[...]

    # self.linear: one weight-stationary [C,C] @ [C, Bb*N] matmul per step.
    # Kept in f32: it feeds the precision-sensitive covariance / sqrtm chain.
    feat_all = jnp.dot(w, x_all, preferred_element_type=jnp.float32)

    i3 = 3.0 * _eye(C)                                         # built once per step

    def group_sum(dense):
        # per-row group sum of a [C, N] tensor: row i accumulates
        # {channels j in group(i)} x {all lanes}.  mask @ dense is lane-dense.
        return jnp.sum(jnp.dot(mask, dense, preferred_element_type=jnp.float32),
                       axis=1, keepdims=True)

    # Covar_Attn per sample (static, lane-aligned column chunks of the block).
    for j in range(bb):
        sl = slice(j * npts, (j + 1) * npts)
        feat = feat_all[:, sl]                                 # [C, N]
        xj = x_all[:, sl]

        # MPNCOV covariance pooling, block-diagonalized over the 4 groups:
        # cross-group blocks are zeroed once; block-diag structure is preserved
        # by every product below, so each NS step is one dense K=C MXU dispatch.
        mu = jnp.sum(feat, axis=1, keepdims=True) * inv_n
        fc = feat - mu
        cov = jnp.einsum('in,jn->ij', fc, fc,
                         preferred_element_type=jnp.float32) * inv_n
        cov = cov * mask
        # per-group trace from the lane-dense centered tensor (no eye reduce),
        # broadcast back to the rows of the owning block.
        tr = group_sum(fc * fc) * inv_n + TR_EPS               # [C, 1]

        # Newton-Schulz square-root iterations (f32 throughout).
        a = cov / tr
        zy = 0.5 * (i3 - a)
        y = jnp.dot(a, zy, preferred_element_type=jnp.float32)
        z = zy
        for _ in range(1, SQRTM_ITERS - 1):
            zy = 0.5 * (i3 - jnp.dot(z, y, preferred_element_type=jnp.float32))
            y, z = (jnp.dot(y, zy, preferred_element_type=jnp.float32),
                    jnp.dot(zy, z, preferred_element_type=jnp.float32))
        sqrtm = 0.5 * jnp.dot(
            y, i3 - jnp.dot(z, y, preferred_element_type=jnp.float32),
            preferred_element_type=jnp.float32) * jnp.sqrt(tr)

        # torch.mean(cov_mat_sqrt, dim=1): sqrtm is symmetric (a polynomial of
        # the symmetric covariance), so the row mean equals this lane-dense
        # per-channel column mean.
        scale = jnp.sum(sqrtm, axis=1, keepdims=True) * inv_cg  # [C, 1]

        # residual + GroupNorm(4, C), single-pass statistics.
        zres = scale * feat + xj
        gmean = group_sum(zres) * inv_gcnt
        zc = zres - gmean
        gvar = group_sum(zc * zc) * inv_gcnt
        zn = zc * jax.lax.rsqrt(gvar + GN_EPS)
        out_ref[:, sl] = (zn * gnw + gnb).astype(out_ref.dtype)


# ------------------------------ stage 2: PointCN ----------------------------
# BatchNorm couples the whole batch -> single grid step over the full batch.
# TODO(synk): at production B/C/N split this into a BN-stats pass plus an
# N/B-tiled normalize+conv pass (pipelined, both v7x TensorCores); at these
# shapes the whole batch fits comfortably in the default scoped VMEM.

def _stage2_kernel(fg_ref, bn1w_ref, bn1b_ref, w1_ref, b1_ref,
                   bn2w_ref, bn2b_ref, w2_ref, wsc_ref, b2sc_ref,
                   out_ref, *, npts):
    feat_gn = fg_ref[...].astype(jnp.float32)                  # [C, B*N]
    total = feat_gn.shape[1]
    batch = total // npts
    inv_n = 1.0 / npts
    inv_bn = 1.0 / total

    def conv(w, t):
        # single lane-dense [O, K] @ [K, B*N] MXU matmul, bf16 in / f32 acc.
        return jnp.dot(w.astype(jnp.bfloat16), t.astype(jnp.bfloat16),
                       preferred_element_type=jnp.float32)

    def instance_norm(t):
        # per (sample, channel) statistics over each sample's lane-aligned
        # N-column chunk (static slices at 128-lane boundaries).
        chunks = []
        for b in range(batch):
            c = t[:, b * npts:(b + 1) * npts]
            m = jnp.sum(c, axis=1, keepdims=True) * inv_n
            cc = c - m
            v = jnp.sum(cc * cc, axis=1, keepdims=True) * inv_n
            chunks.append(cc * jax.lax.rsqrt(v + IN_EPS))
        return chunks[0] if batch == 1 else jnp.concatenate(chunks, axis=1)

    def batch_norm(t, w, b):
        # per-channel statistics over all B*N lanes (training-mode stats).
        m = jnp.sum(t, axis=1, keepdims=True) * inv_bn
        tc = t - m
        v = jnp.sum(tc * tc, axis=1, keepdims=True) * inv_bn
        return tc * jax.lax.rsqrt(v + BN_EPS) * w + b

    t = instance_norm(feat_gn)
    t = jnp.maximum(batch_norm(t, bn1w_ref[...], bn1b_ref[...]), 0.0)
    t = conv(w1_ref[...], t) + b1_ref[...]
    t = instance_norm(t)
    t = jnp.maximum(batch_norm(t, bn2w_ref[...], bn2b_ref[...]), 0.0)

    # final conv + shortcut: two accumulated matmuls (K=O and K=C) sharing a
    # pre-summed bias -- avoids the [O+C, B*N] concat copy.
    out = conv(w2_ref[...], t) + conv(wsc_ref[...], feat_gn) + b2sc_ref[...]

    for b in range(batch):                                     # back to [B, O, N]
        out_ref[b] = out[:, b * npts:(b + 1) * npts].astype(out_ref.dtype)


# ------------------------------ host wrapper --------------------------------

def multihead_covar_attn(x_nchw, params):
    B, C, N, W = x_nchw.shape
    assert W == 1 and C % GROUPS == 0
    O = params['w2'].shape[0]

    # channel-major [C, B*N] internal layout (one input transpose): every 1x1
    # conv becomes a single lane-dense 2-D matmul and every norm a lane reduce.
    x_cm = jnp.transpose(x_nchw[..., 0].astype(jnp.float32),
                         (1, 0, 2)).reshape(C, B * N)
    mask = _group_mask(C)

    bb = _pick_block_b(B)
    grid1 = B // bb

    # stage 1: grid over sample blocks (per-sample statistics) -> megacore.
    feat_gn = pl.pallas_call(
        functools.partial(_stage1_kernel, npts=N),
        out_shape=jax.ShapeDtypeStruct((C, B * N), jnp.float32),
        grid=(grid1,),
        in_specs=[pl.BlockSpec((C, bb * N), lambda i: (0, i)),
                  pl.BlockSpec((C, C), lambda i: (0, 0)),
                  pl.BlockSpec((C, C), lambda i: (0, 0)),
                  pl.BlockSpec((C, 1), lambda i: (0, 0)),
                  pl.BlockSpec((C, 1), lambda i: (0, 0))],
        out_specs=pl.BlockSpec((C, bb * N), lambda i: (0, i)),
        compiler_params=pltpu.CompilerParams(
            dimension_semantics=("parallel",)),
    )(x_cm, params['w_lin'], mask, params['gn_w'], params['gn_b'])
    # TODO(synk): at production B*N, store feat_gn as bf16 to halve the
    # inter-stage HBM round trip (precision permitting).

    b2sc = params['b2'] + params['b_sc']                       # pre-summed bias

    def fullspec(shape):
        nd = len(shape)
        return pl.BlockSpec(shape, lambda i, nd=nd: (0,) * nd)

    args = (feat_gn, params['bn1_w'], params['bn1_b'], params['w1'], params['b1'],
            params['bn2_w'], params['bn2_b'], params['w2'], params['w_sc'], b2sc)

    out = pl.pallas_call(
        functools.partial(_stage2_kernel, npts=N),
        out_shape=jax.ShapeDtypeStruct((B, O, N), jnp.float32),
        grid=(1,),
        in_specs=[fullspec(a.shape) for a in args],
        out_specs=fullspec((B, O, N)),
        compiler_params=pltpu.CompilerParams(
            dimension_semantics=("arbitrary",)),
    )(*args)
    return out[..., None]                                      # back to NCHW


# ----------------------- deterministic parameter init -----------------------

def init_params(key, C, O):
    ks = jax.random.split(key, 16)

    def conv_w(k, o, c):
        b = 1.0 / (c ** 0.5)
        return jax.random.uniform(k, (o, c), jnp.float32, -b, b)

    def conv_b(k, o, c):
        b = 1.0 / (c ** 0.5)
        return jax.random.uniform(k, (o, 1), jnp.float32, -b, b)

    def norm_w(k, c):
        return jax.random.uniform(k, (c, 1), jnp.float32, 0.5, 1.5)

    def norm_b(k, c):
        return jax.random.uniform(k, (c, 1), jnp.float32, -0.2, 0.2)

    return {
        'w_lin': conv_w(ks[0], C, C),                 # self.linear (bias=False)
        'gn_w': norm_w(ks[1], C), 'gn_b': norm_b(ks[2], C),
        'bn1_w': norm_w(ks[3], C), 'bn1_b': norm_b(ks[4], C),
        'w1': conv_w(ks[5], O, C), 'b1': conv_b(ks[6], O, C),
        'bn2_w': norm_w(ks[7], O), 'bn2_b': norm_b(ks[8], O),
        'w2': conv_w(ks[9], O, O), 'b2': conv_b(ks[10], O, O),
        'w_sc': conv_w(ks[11], O, C), 'b_sc': conv_b(ks[12], O, C),
    }


# --------------------------- pure-JAX reference -----------------------------

def reference(x_nchw, params):
    x = x_nchw[..., 0].astype(jnp.float32)
    B, C, N = x.shape
    Cg = C // GROUPS
    feat = jnp.einsum('oc,bcn->bon', params['w_lin'], x)
    groups = []
    for g in range(GROUPS):
        fg = feat[:, g * Cg:(g + 1) * Cg, :]
        xg = x[:, g * Cg:(g + 1) * Cg, :]
        mu = fg.mean(axis=2, keepdims=True)
        xc = fg - mu
        cov = jnp.einsum('bin,bjn->bij', xc, xc) / N
        eye = jnp.eye(Cg, dtype=jnp.float32)[None]
        i3 = 3.0 * eye
        tr = jnp.trace(cov, axis1=1, axis2=2)[:, None, None]
        a = cov / tr
        zy = 0.5 * (i3 - a)
        y, z = a @ zy, zy
        for _ in range(1, SQRTM_ITERS - 1):
            zy = 0.5 * (i3 - z @ y)
            y, z = y @ zy, zy @ z
        sqrtm = 0.5 * (y @ (i3 - z @ y)) * jnp.sqrt(tr)
        zg = sqrtm.mean(axis=1)[:, :, None] * fg + xg
        m = zg.mean(axis=(1, 2), keepdims=True)
        v = zg.var(axis=(1, 2), keepdims=True)
        zn = (zg - m) / jnp.sqrt(v + GN_EPS)
        gw = params['gn_w'][g * Cg:(g + 1) * Cg]
        gb = params['gn_b'][g * Cg:(g + 1) * Cg]
        groups.append(zn * gw[None] + gb[None])
    feat_gn = jnp.concatenate(groups, axis=1)

    def inorm(t):
        return (t - t.mean(axis=2, keepdims=True)) / jnp.sqrt(
            t.var(axis=2, keepdims=True) + IN_EPS)

    def bnorm(t, w, b):
        return (t - t.mean(axis=(0, 2), keepdims=True)) / jnp.sqrt(
            t.var(axis=(0, 2), keepdims=True) + BN_EPS) * w[None] + b[None]

    def conv(w, t, b):
        return jnp.einsum('oc,bcn->bon', w, t) + b[None]

    t = inorm(feat_gn)
    t = bnorm(t, params['bn1_w'], params['bn1_b'])
    t = jax.nn.relu(t)
    t = conv(params['w1'], t, params['b1'])
    t = inorm(t)
    t = bnorm(t, params['bn2_w'], params['bn2_b'])
    t = jax.nn.relu(t)
    t = conv(params['w2'], t, params['b2'])
    sc = conv(params['w_sc'], feat_gn, params['b_sc'])
    return (t + sc)[..., None]


if __name__ == "__main__":
    key = jax.random.PRNGKey(0)
    B, C, O, N = 2, 32, 48, 128        # inchannel=32, outchannel=48, num_pts=128
    kx, kp = jax.random.split(key)
    x = jax.random.normal(kx, (B, C, N, 1), jnp.float32)
    params = init_params(kp, C, O)

    out = jax.block_until_ready(multihead_covar_attn(x, params))
    ref = jax.block_until_ready(reference(x, params))

    assert out.shape == (B, O, N, 1)
    err = float(jnp.max(jnp.abs(out - ref)))
    if not (err < 5e-2):
        raise AssertionError("kernel/reference mismatch: %g" % err)
    print("KERNEL_OK")
</pallas_src>

<mosaic_0001>
module attributes {stable_mosaic.version = 11 : i64} {
  func.func @_stage1_kernel(%arg0: i32, %arg1: memref<32x128xf32, #tpu.memory_space<vmem>>, %arg2: memref<32x32xf32, #tpu.memory_space<vmem>>, %arg3: memref<32x32xf32, #tpu.memory_space<vmem>>, %arg4: memref<32x1xf32, #tpu.memory_space<vmem>>, %arg5: memref<32x1xf32, #tpu.memory_space<vmem>>, %arg6: memref<32x128xf32, #tpu.memory_space<vmem>>) attributes {dimension_semantics = [#tpu.dimension_semantics<parallel>], iteration_bounds = array<i64: 2>, scalar_prefetch = 0 : i64, scratch_operands = 0 : i64, tpu.core_type = #tpu.core_type<tc>, window_params = [{transform_indices = @transform_0, window_bounds = array<i64: 32, 128>}, {pipeline_mode = #tpu.pipeline_mode<synchronous>, transform_indices = @transform_1, window_bounds = array<i64: 32, 32>}, {pipeline_mode = #tpu.pipeline_mode<synchronous>, transform_indices = @transform_2, window_bounds = array<i64: 32, 32>}, {pipeline_mode = #tpu.pipeline_mode<synchronous>, transform_indices = @transform_3, window_bounds = array<i64: 32, 1>}, {pipeline_mode = #tpu.pipeline_mode<synchronous>, transform_indices = @transform_4, window_bounds = array<i64: 32, 1>}, {transform_indices = @transform_5, window_bounds = array<i64: 32, 128>}]} {
    %c0 = arith.constant 0 : index
    %c0_0 = arith.constant 0 : index
    %0 = vector.load %arg1[%c0, %c0_0] : memref<32x128xf32, #tpu.memory_space<vmem>>, vector<32x128xf32>
    %c0_1 = arith.constant 0 : index
    %c0_2 = arith.constant 0 : index
    %1 = vector.load %arg2[%c0_1, %c0_2] : memref<32x32xf32, #tpu.memory_space<vmem>>, vector<32x32xf32>
    %c0_3 = arith.constant 0 : index
    %c0_4 = arith.constant 0 : index
    %2 = vector.load %arg3[%c0_3, %c0_4] : memref<32x32xf32, #tpu.memory_space<vmem>>, vector<32x32xf32>
    %c0_5 = arith.constant 0 : index
    %c0_6 = arith.constant 0 : index
    %3 = vector.load %arg4[%c0_5, %c0_6] : memref<32x1xf32, #tpu.memory_space<vmem>>, vector<32x1xf32>
    %c0_7 = arith.constant 0 : index
    %c0_8 = arith.constant 0 : index
    %4 = vector.load %arg5[%c0_7, %c0_8] : memref<32x1xf32, #tpu.memory_space<vmem>>, vector<32x1xf32>
    %cst = arith.constant dense<0.000000e+00> : vector<32x128xf32>
    %5 = tpu.matmul %1, %0, %cst {dimension_numbers = #tpu.dot_dimension_numbers<[1], [0], [0], [1], [0, 0, 1, 1], [], []>} : vector<32x32xf32>, vector<32x128xf32>, vector<32x128xf32> -> vector<32x128xf32>
    %6 = tpu.iota {dimensions = array<i32: 0>} : vector<32x32xi32>
    %7 = tpu.iota {dimensions = array<i32: 1>} : vector<32x32xi32>
    %8 = arith.cmpi eq, %6, %7 : vector<32x32xi32>
    %9 = arith.extui %8 : vector<32x32xi1> to vector<32x32xi32>
    %10 = arith.sitofp %9 : vector<32x32xi32> to vector<32x32xf32>
    %cst_9 = arith.constant 3.000000e+00 : f32
    %11 = vector.broadcast %cst_9 : f32 to vector<32x32xf32>
    %12 = arith.mulf %11, %10 : vector<32x32xf32>
    %cst_10 = arith.constant dense<0.000000e+00> : vector<32xf32>
    %13 = vector.multi_reduction <add>, %5, %cst_10 [1] : vector<32x128xf32> to vector<32xf32>
    %14 = vector.shape_cast %13 : vector<32xf32> to vector<32x1xf32>
    %cst_11 = arith.constant 7.812500e-03 : f32
    %15 = vector.broadcast %cst_11 : f32 to vector<32x1xf32>
    %16 = arith.mulf %14, %15 : vector<32x1xf32>
    %17 = vector.broadcast %16 : vector<32x1xf32> to vector<32x128xf32>
    %18 = arith.subf %5, %17 : vector<32x128xf32>
    "tpu.trace_start"() <{level = 10 : i32, message = "in,jn->ij"}> : () -> ()
    %cst_12 = arith.constant dense<0.000000e+00> : vector<32x32xf32>
    %19 = tpu.matmul %18, %18, %cst_12 {dimension_numbers = #tpu.dot_dimension_numbers<[1], [1], [0], [0], [0, 0, 1, 0], [], []>} : vector<32x128xf32>, vector<32x128xf32>, vector<32x32xf32> -> vector<32x32xf32>
    "tpu.trace_stop"() : () -> ()
    %cst_13 = arith.constant 7.812500e-03 : f32
    %20 = vector.broadcast %cst_13 : f32 to vector<32x32xf32>
    %21 = arith.mulf %19, %20 : vector<32x32xf32>
    %22 = arith.mulf %21, %2 : vector<32x32xf32>
    %23 = arith.mulf %18, %18 : vector<32x128xf32>
    %cst_14 = arith.constant dense<0.000000e+00> : vector<32x128xf32>
    %24 = tpu.matmul %2, %23, %cst_14 {dimension_numbers = #tpu.dot_dimension_numbers<[1], [0], [0], [1], [0, 0, 1, 1], [], []>} : vector<32x32xf32>, vector<32x128xf32>, vector<32x128xf32> -> vector<32x128xf32>
    %cst_15 = arith.constant dense<0.000000e+00> : vector<32xf32>
    %25 = vector.multi_reduction <add>, %24, %cst_15 [1] : vector<32x128xf32> to vector<32xf32>
    %26 = vector.shape_cast %25 : vector<32xf32> to vector<32x1xf32>
    %cst_16 = arith.constant 7.812500e-03 : f32
    %27 = vector.broadcast %cst_16 : f32 to vector<32x1xf32>
    %28 = arith.mulf %26, %27 : vector<32x1xf32>
    %cst_17 = arith.constant 9.99999996E-13 : f32
    %29 = vector.broadcast %cst_17 : f32 to vector<32x1xf32>
    %30 = arith.addf %28, %29 : vector<32x1xf32>
    %31 = vector.broadcast %30 : vector<32x1xf32> to vector<32x32xf32>
    %32 = arith.divf %22, %31 : vector<32x32xf32>
    %33 = arith.subf %12, %32 : vector<32x32xf32>
    %cst_18 = arith.constant 5.000000e-01 : f32
    %34 = vector.broadcast %cst_18 : f32 to vector<32x32xf32>
    %35 = arith.mulf %34, %33 : vector<32x32xf32>
    %cst_19 = arith.constant dense<0.000000e+00> : vector<32x32xf32>
    %36 = tpu.matmul %32, %35, %cst_19 {dimension_numbers = #tpu.dot_dimension_numbers<[1], [0], [0], [1], [0, 0, 1, 1], [], []>} : vector<32x32xf32>, vector<32x32xf32>, vector<32x32xf32> -> vector<32x32xf32>
    %cst_20 = arith.constant dense<0.000000e+00> : vector<32x32xf32>
    %37 = tpu.matmul %35, %36, %cst_20 {dimension_numbers = #tpu.dot_dimension_numbers<[1], [0], [0], [1], [0, 0, 1, 1], [], []>} : vector<32x32xf32>, vector<32x32xf32>, vector<32x32xf32> -> vector<32x32xf32>
    %38 = arith.subf %12, %37 : vector<32x32xf32>
    %cst_21 = arith.constant 5.000000e-01 : f32
    %39 = vector.broadcast %cst_21 : f32 to vector<32x32xf32>
    %40 = arith.mulf %39, %38 : vector<32x32xf32>
    %cst_22 = arith.constant dense<0.000000e+00> : vector<32x32xf32>
    %41 = tpu.matmul %36, %40, %cst_22 {dimension_numbers = #tpu.dot_dimension_numbers<[1], [0], [0], [1], [0, 0, 1, 1], [], []>} : vector<32x32xf32>, vector<32x32xf32>, vector<32x32xf32> -> vector<32x32xf32>
    %cst_23 = arith.constant dense<0.000000e+00> : vector<32x32xf32>
    %42 = tpu.matmul %40, %35, %cst_23 {dimension_numbers = #tpu.dot_dimension_numbers<[1], [0], [0], [1], [0, 0, 1, 1], [], []>} : vector<32x32xf32>, vector<32x32xf32>, vector<32x32xf32> -> vector<32x32xf32>
    %cst_24 = arith.constant dense<0.000000e+00> : vector<32x32xf32>
    %43 = tpu.matmul %42, %41, %cst_24 {dimension_numbers = #tpu.dot_dimension_numbers<[1], [0], [0], [1], [0, 0, 1, 1], [], []>} : vector<32x32xf32>, vector<32x32xf32>, vector<32x32xf32> -> vector<32x32xf32>
    %44 = arith.subf %12, %43 : vector<32x32xf32>
    %cst_25 = arith.constant 5.000000e-01 : f32
    %45 = vector.broadcast %cst_25 : f32 to vector<32x32xf32>
    %46 = arith.mulf %45, %44 : vector<32x32xf32>
    %cst_26 = arith.constant dense<0.000000e+00> : vector<32x32xf32>
    %47 = tpu.matmul %41, %46, %cst_26 {dimension_numbers = #tpu.dot_dimension_numbers<[1], [0], [0], [1], [0, 0, 1, 1], [], []>} : vector<32x32xf32>, vector<32x32xf32>, vector<32x32xf32> -> vector<32x32xf32>
    %cst_27 = arith.constant dense<0.000000e+00> : vector<32x32xf32>
    %48 = tpu.matmul %46, %42, %cst_27 {dimension_numbers = #tpu.dot_dimension_numbers<[1], [0], [0], [1], [0, 0, 1, 1], [], []>} : vector<32x32xf32>, vector<32x32xf32>, vector<32x32xf32> -> vector<32x32xf32>
    %cst_28 = arith.constant dense<0.000000e+00> : vector<32x32xf32>
    %49 = tpu.matmul %48, %47, %cst_28 {dimension_numbers = #tpu.dot_dimension_numbers<[1], [0], [0], [1], [0, 0, 1, 1], [], []>} : vector<32x32xf32>, vector<32x32xf32>, vector<32x32xf32> -> vector<32x32xf32>
    %50 = arith.subf %12, %49 : vector<32x32xf32>
    %cst_29 = arith.constant 5.000000e-01 : f32
    %51 = vector.broadcast %cst_29 : f32 to vector<32x32xf32>
    %52 = arith.mulf %51, %50 : vector<32x32xf32>
    %cst_30 = arith.constant dense<0.000000e+00> : vector<32x32xf32>
    %53 = tpu.matmul %47, %52, %cst_30 {dimension_numbers = #tpu.dot_dimension_numbers<[1], [0], [0], [1], [0, 0, 1, 1], [], []>} : vector<32x32xf32>, vector<32x32xf32>, vector<32x32xf32> -> vector<32x32xf32>
    %cst_31 = arith.constant dense<0.000000e+00> : vector<32x32xf32>
    %54 = tpu.matmul %52, %48, %cst_31 {dimension_numbers = #tpu.dot_dimension_numbers<[1], [0], [0], [1], [0, 0, 1, 1], [], []>} : vector<32x32xf32>, vector<32x32xf32>, vector<32x32xf32> -> vector<32x32xf32>
    %cst_32 = arith.constant dense<0.000000e+00> : vector<32x32xf32>
    %55 = tpu.matmul %54, %53, %cst_32 {dimension_numbers = #tpu.dot_dimension_numbers<[1], [0], [0], [1], [0, 0, 1, 1], [], []>} : vector<32x32xf32>, vector<32x32xf32>, vector<32x32xf32> -> vector<32x32xf32>
    %56 = arith.subf %12, %55 : vector<32x32xf32>
    %cst_33 = arith.constant dense<0.000000e+00> : vector<32x32xf32>
    %57 = tpu.matmul %53, %56, %cst_33 {dimension_numbers = #tpu.dot_dimension_numbers<[1], [0], [0], [1], [0, 0, 1, 1], [], []>} : vector<32x32xf32>, vector<32x32xf32>, vector<32x32xf32> -> vector<32x32xf32>
    %cst_34 = arith.constant 5.000000e-01 : f32
    %58 = vector.broadcast %cst_34 : f32 to vector<32x32xf32>
    %59 = arith.mulf %58, %57 : vector<32x32xf32>
    %60 = math.sqrt %30 : vector<32x1xf32>
    %61 = vector.broadcast %60 : vector<32x1xf32> to vector<32x32xf32>
    %62 = arith.mulf %59, %61 : vector<32x32xf32>
    %cst_35 = arith.constant dense<0.000000e+00> : vector<32xf32>
    %63 = vector.multi_reduction <add>, %62, %cst_35 [1] : vector<32x32xf32> to vector<32xf32>
    %64 = vector.shape_cast %63 : vector<32xf32> to vector<32x1xf32>
    %cst_36 = arith.constant 1.250000e-01 : f32
    %65 = vector.broadcast %cst_36 : f32 to vector<32x1xf32>
    %66 = arith.mulf %64, %65 : vector<32x1xf32>
    %67 = vector.broadcast %66 : vector<32x1xf32> to vector<32x128xf32>
    %68 = arith.mulf %67, %5 : vector<32x128xf32>
    %69 = arith.addf %68, %0 : vector<32x128xf32>
    %cst_37 = arith.constant dense<0.000000e+00> : vector<32x128xf32>
    %70 = tpu.matmul %2, %69, %cst_37 {dimension_numbers = #tpu.dot_dimension_numbers<[1], [0], [0], [1], [0, 0, 1, 1], [], []>} : vector<32x32xf32>, vector<32x128xf32>, vector<32x128xf32> -> vector<32x128xf32>
    %cst_38 = arith.constant dense<0.000000e+00> : vector<32xf32>
    %71 = vector.multi_reduction <add>, %70, %cst_38 [1] : vector<32x128xf32> to vector<32xf32>
    %72 = vector.shape_cast %71 : vector<32xf32> to vector<32x1xf32>
    %cst_39 = arith.constant 9.765625E-4 : f32
    %73 = vector.broadcast %cst_39 : f32 to vector<32x1xf32>
    %74 = arith.mulf %72, %73 : vector<32x1xf32>
    %75 = vector.broadcast %74 : vector<32x1xf32> to vector<32x128xf32>
    %76 = arith.subf %69, %75 : vector<32x128xf32>
    %77 = arith.mulf %76, %76 : vector<32x128xf32>
    %cst_40 = arith.constant dense<0.000000e+00> : vector<32x128xf32>
    %78 = tpu.matmul %2, %77, %cst_40 {dimension_numbers = #tpu.dot_dimension_numbers<[1], [0], [0], [1], [0, 0, 1, 1], [], []>} : vector<32x32xf32>, vector<32x128xf32>, vector<32x128xf32> -> vector<32x128xf32>
    %cst_41 = arith.constant dense<0.000000e+00> : vector<32xf32>
    %79 = vector.multi_reduction <add>, %78, %cst_41 [1] : vector<32x128xf32> to vector<32xf32>
    %80 = vector.shape_cast %79 : vector<32xf32> to vector<32x1xf32>
    %cst_42 = arith.constant 9.765625E-4 : f32
    %81 = vector.broadcast %cst_42 : f32 to vector<32x1xf32>
    %82 = arith.mulf %80, %81 : vector<32x1xf32>
    %cst_43 = arith.constant 9.99999974E-6 : f32
    %83 = vector.broadcast %cst_43 : f32 to vector<32x1xf32>
    %84 = arith.addf %82, %83 : vector<32x1xf32>
    %85 = math.rsqrt %84 : vector<32x1xf32>
    %86 = vector.broadcast %85 : vector<32x1xf32> to vector<32x128xf32>
    %87 = arith.mulf %76, %86 : vector<32x128xf32>
    %88 = vector.broadcast %3 : vector<32x1xf32> to vector<32x128xf32>
    %89 = arith.mulf %87, %88 : vector<32x128xf32>
    %90 = vector.broadcast %4 : vector<32x1xf32> to vector<32x128xf32>
    %91 = arith.addf %89, %90 : vector<32x128xf32>
    %c0_44 = arith.constant 0 : index
    %c0_45 = arith.constant 0 : index
    %92 = vector.load %arg6[%c0_44, %c0_45] : memref<32x128xf32, #tpu.memory_space<vmem>>, vector<32x128xf32>
    tpu.vector_store %arg6[%c0_44, %c0_45], %91 {strides = array<i32>} : memref<32x128xf32, #tpu.memory_space<vmem>>, vector<32x128xf32>,
    return
  }
  func.func @transform_0(%arg0: i32) -> (i32, i32) {
    %c0_i32 = arith.constant 0 : i32
    %c0_i32_0 = arith.constant 0 : i32
    return %c0_i32, %arg0 : i32, i32
  }
  func.func @transform_1(%arg0: i32) -> (i32, i32) {
    %c0_i32 = arith.constant 0 : i32
    %c0_i32_0 = arith.constant 0 : i32
    %c0_i32_1 = arith.constant 0 : i32
    return %c0_i32, %c0_i32_0 : i32, i32
  }
  func.func @transform_2(%arg0: i32) -> (i32, i32) {
    %c0_i32 = arith.constant 0 : i32
    %c0_i32_0 = arith.constant 0 : i32
    %c0_i32_1 = arith.constant 0 : i32
    return %c0_i32, %c0_i32_0 : i32, i32
  }
  func.func @transform_3(%arg0: i32) -> (i32, i32) {
    %c0_i32 = arith.constant 0 : i32
    %c0_i32_0 = arith.constant 0 : i32
    %c0_i32_1 = arith.constant 0 : i32
    return %c0_i32, %c0_i32_0 : i32, i32
  }
  func.func @transform_4(%arg0: i32) -> (i32, i32) {
    %c0_i32 = arith.constant 0 : i32
    %c0_i32_0 = arith.constant 0 : i32
    %c0_i32_1 = arith.constant 0 : i32
    return %c0_i32, %c0_i32_0 : i32, i32
  }
  func.func @transform_5(%arg0: i32) -> (i32, i32) {
    %c0_i32 = arith.constant 0 : i32
    %c0_i32_0 = arith.constant 0 : i32
    return %c0_i32, %arg0 : i32, i32
  }
}

</mosaic_0001>

<llo_original>
// kernel: tpu_custom_call.1
$region0: #{tpu_custom_call.1}
  #allocation0 [shape = 'u32[]', space=smem, size = 0x4, offset = 0x4, fixed_abs, tag = 'smem constant byte address 0x4 - core index']
  #allocation1 [shape = 'u32[72,128]{1,0:T(1,128)}', space=vmem, size = 0x9000, scoped, tag = 'internal scratch']
  %s0 = inlined_call_operand.vmem [shape: f32[32,256], index: 0, kind: input, shape index: {}]
  %s1 = inlined_call_operand.hbm [shape: f32[32,32], index: 1, kind: input, shape index: {}]
  %s2 = inlined_call_operand.hbm [shape: f32[32,32], index: 2, kind: input, shape index: {}]
  %s3 = inlined_call_operand.vmem [shape: f32[32,1], index: 3, kind: input, shape index: {}]
  %s4 = inlined_call_operand.vmem [shape: f32[32,1], index: 4, kind: input, shape index: {}]
  %s5 = inlined_call_operand.hbm [shape: f32[32,256], index: 5, kind: output, shape index: {}]
  %s6 = sld [smem:[#allocation0]]
  $region99: #{tpu_custom_call.1} parent=0
    _
  %s8 = ssub.s32 1, %s6
  %s9 = scalar_select 0, %s8, %s6
  $region1: #{tpu_custom_call.1} parent=0
    #allocation2 [shape = 'u8[32768]{0}', space=vmem, size = 0x8000, scoped, tag = 'input window, operand 0']
    #allocation3 [shape = 'u8[16384]{0}', space=vmem, size = 0x4000, scoped, tag = 'input window, operand 1, single buffered']
    #allocation4 [shape = 's32[2]{0}', space=sflag, size = 0x8, scoped, tag = 'scoped memory for tpu_custom_call.1']
    #allocation5 [shape = 's32[2]{0}', space=sflag, size = 0x8, scoped, tag = 'scoped memory for tpu_custom_call.1']
    #allocation6 [shape = 'u8[16384]{0}', space=vmem, size = 0x4000, scoped, tag = 'input window, operand 2, single buffered']
    #allocation7 [shape = 's32[1]{0}', space=sflag, size = 0x4, scoped, tag = 'scoped memory for tpu_custom_call.1']
    #allocation8 [shape = 'u8[32768]{0}', space=vmem, size = 0x8000, scoped, tag = 'output window, operand 0']
    %10 = vsyncpa [#allocation4], 0
    %11 = vsyncpa [#allocation7], 0
    %12 = vsyncpa [#allocation5], 0
    %s13 = scalar_lea.sflag [#allocation5], 1
    %14 = vsyncpa %s13, 0
    loop: start=0, step=1, limit=4
    $region2: #{tpu_custom_call.1} parent=1 // loop_pre_header
      _
    $region3: #{tpu_custom_call.1} parent=1 // loop_header
      %s16 = sphi 0, %s20
      %p17 = scmp.ge.s32.totalorder %s16, 4
      %s26 = sphi 0, %s28
      %s29 = sphi 0, %s26
      %s30 = sphi 0, %s29
      %s46 = sphi 0, %s30
      %s50 = sphi 0, %s50
      %s52 = sphi 0, %s50
      %s53 = sphi 0, %s52
      %s67 = sphi 0, %s53
      %s71 = sphi 0, %s71
      %s73 = sphi 0, %s71
      %s74 = sphi 0, %s73
      %s88 = sphi 0, %s74
      %s92 = sphi 0, %s92
      %s94 = sphi 0, %s92
      %s95 = sphi 0, %s94
      %s109 = sphi 0, %s95
      %s113 = sphi 0, %s113
      %s115 = sphi 0, %s113
      %s116 = sphi 0, %s115
      %s130 = sphi 0, %s116
      %s136 = sphi 0, %s138
      %s139 = sphi 0, %s136
      %s140 = sphi 0, %s139
      %s156 = sphi 0, %s140
    $region4: #{tpu_custom_call.1} parent=1 // loop_header_branch
      %19 = sbr.rel (%p17) target = $region8
    $region5: #{tpu_custom_call.1} parent=1 // loop_body
      %s21 = ssub.s32 %s16, 1
      %s22 = ssub.s32 %s16, 2
      %s23 = sadd.s32 %s16, 1
      %s24 = ssub.s32 %s16, %s23
      %p25 = scmp.eq.s32.totalorder %s24, 0
      %s27 = sadd.s32 %s26, 1
      %s28 = scalar_select %p25, %s26, %s27
      %p31 = pneg %p25
      %p32 = scmp.eq.s32.totalorder %s16, 1
      %p33 = por %p31, %p32
      %p34 = scmp.ne.s32.totalorder %s26, %s29
      %p35 = scmp.eq.s32.totalorder %s16, 0
      %p36 = por %p34, %p35
      %p37 = scmp.ne.s32.totalorder %s26, %s29
      %p38 = scmp.eq.s32.totalorder %s21, 1
      %p39 = por %p37, %p38
      %p40 = scmp.ne.s32.totalorder %s29, %s30
      %p41 = scmp.eq.s32.totalorder %s21, 0
      %p42 = por %p40, %p41
      %p43 = scmp.ne.s32.totalorder %s29, %s30
      %p44 = scmp.eq.s32.totalorder %s22, 1
      %p45 = por %p43, %p44
      %p47 = scmp.ne.s32.totalorder %s30, %s46
      %p48 = scmp.eq.s32.totalorder %s22, 0
      %p49 = por %p47, %p48
      %s51 = sadd.s32 %s50, 1
      %p54 = scmp.eq.s32.totalorder %s16, 1
      %p55 = scmp.ne.s32.totalorder %s50, %s52
      %p56 = scmp.eq.s32.totalorder %s16, 0
      %p57 = por %p55, %p56
      %p58 = scmp.ne.s32.totalorder %s50, %s52
      %p59 = scmp.eq.s32.totalorder %s21, 1
      %p60 = por %p58, %p59
      %p61 = scmp.ne.s32.totalorder %s52, %s53
      %p62 = scmp.eq.s32.totalorder %s21, 0
      %p63 = por %p61, %p62
      %p64 = scmp.ne.s32.totalorder %s52, %s53
      %p65 = scmp.eq.s32.totalorder %s22, 1
      %p66 = por %p64, %p65
      %p68 = scmp.ne.s32.totalorder %s53, %s67
      %p69 = scmp.eq.s32.totalorder %s22, 0
      %p70 = por %p68, %p69
      %s72 = sadd.s32 %s71, 1
      %p75 = scmp.eq.s32.totalorder %s16, 1
      %p76 = scmp.ne.s32.totalorder %s71, %s73
      %p77 = scmp.eq.s32.totalorder %s16, 0
      %p78 = por %p76, %p77
      %p79 = scmp.ne.s32.totalorder %s71, %s73
      %p80 = scmp.eq.s32.totalorder %s21, 1
      %p81 = por %p79, %p80
      %p82 = scmp.ne.s32.totalorder %s73, %s74
      %p83 = scmp.eq.s32.totalorder %s21, 0
      %p84 = por %p82, %p83
      %p85 = scmp.ne.s32.totalorder %s73, %s74
      %p86 = scmp.eq.s32.totalorder %s22, 1
      %p87 = por %p85, %p86
      %p89 = scmp.ne.s32.totalorder %s74, %s88
      %p90 = scmp.eq.s32.totalorder %s22, 0
      %p91 = por %p89, %p90
      %s93 = sadd.s32 %s92, 1
      %p96 = scmp.eq.s32.totalorder %s16, 1
      %p97 = scmp.ne.s32.totalorder %s92, %s94
      %p98 = scmp.eq.s32.totalorder %s16, 0
      %p99 = por %p97, %p98
      %p100 = scmp.ne.s32.totalorder %s92, %s94
      %p101 = scmp.eq.s32.totalorder %s21, 1
      %p102 = por %p100, %p101
      %p103 = scmp.ne.s32.totalorder %s94, %s95
      %p104 = scmp.eq.s32.totalorder %s21, 0
      %p105 = por %p103, %p104
      %p106 = scmp.ne.s32.totalorder %s94, %s95
      %p107 = scmp.eq.s32.totalorder %s22, 1
      %p108 = por %p106, %p107
      %p110 = scmp.ne.s32.totalorder %s95, %s109
      %p111 = scmp.eq.s32.totalorder %s22, 0
      %p112 = por %p110, %p111
      %s114 = sadd.s32 %s113, 1
      %p117 = scmp.eq.s32.totalorder %s16, 1
      %p118 = scmp.ne.s32.totalorder %s113, %s115
      %p119 = scmp.eq.s32.totalorder %s16, 0
      %p120 = por %p118, %p119
      %p121 = scmp.ne.s32.totalorder %s113, %s115
      %p122 = scmp.eq.s32.totalorder %s21, 1
      %p123 = por %p121, %p122
      %p124 = scmp.ne.s32.totalorder %s115, %s116
      %p125 = scmp.eq.s32.totalorder %s21, 0
      %p126 = por %p124, %p125
      %p127 = scmp.ne.s32.totalorder %s115, %s116
      %p128 = scmp.eq.s32.totalorder %s22, 1
      %p129 = por %p127, %p128
      %p131 = scmp.ne.s32.totalorder %s116, %s130
      %p132 = scmp.eq.s32.totalorder %s22, 0
      %p133 = por %p131, %p132
      %s134 = ssub.s32 %s16, %s23
      %p135 = scmp.eq.s32.totalorder %s134, 0
      %s137 = sadd.s32 %s136, 1
      %s138 = scalar_select %p135, %s136, %s137
      %p141 = pneg %p135
      %p142 = scmp.eq.s32.totalorder %s16, 1
      %p143 = por %p141, %p142
      %p144 = scmp.ne.s32.totalorder %s136, %s139
      %p145 = scmp.eq.s32.totalorder %s16, 0
      %p146 = por %p144, %p145
      %p147 = scmp.ne.s32.totalorder %s136, %s139
      %p148 = scmp.eq.s32.totalorder %s21, 1
      %p149 = por %p147, %p148
      %p150 = scmp.ne.s32.totalorder %s139, %s140
      %p151 = scmp.eq.s32.totalorder %s21, 0
      %p152 = por %p150, %p151
      %p153 = scmp.ne.s32.totalorder %s139, %s140
      %p154 = scmp.eq.s32.totalorder %s22, 1
      %p155 = por %p153, %p154
      %p157 = scmp.ne.s32.totalorder %s140, %s156
      %p158 = scmp.eq.s32.totalorder %s22, 0
      %p159 = por %p157, %p158
      %p160 = scmp.le.s32.totalorder 1, %s16
      %p161 = scmp.lt.s32.totalorder %s16, 3
      %p162 = pnand %p160, %p161
      %p163 = pneg %p162
      // Predicated region
      $region9: #{tpu_custom_call.1} parent=5 // pred_check
        _
      $region10: #{tpu_custom_call.1} parent=5 // pred_check_branch
        %165 = sbr.rel (%p162) target = $region12
      $region11: #{tpu_custom_call.1} parent=5 // pred_region
        %s166 = ssub.s32 %s16, 1
        // Predicated region
        $region13: #{tpu_custom_call.1} parent=11 // pred_check
          %p167 = pneg %p63
        $region14: #{tpu_custom_call.1} parent=11 // pred_check_branch
          %169 = sbr.rel (%p167) target = $region16
        $region15: #{tpu_custom_call.1} parent=11 // pred_region
          %171 = vsyncadd [#allocation4], 0
          %s172 = sshll.u32 %s1, 4
          %s173 = int_to_ptr.hbm [resolvable:$true] %s172
          %s174 = sshll.u32 [#allocation3], 4
          %s175 = int_to_ptr.vmem [resolvable:$true] %s174
          %180 = dma.hbm_to_vmem [thread:$0]  %s173, 512, %s175, [#allocation4], 128, 128, 8
        $region16: #{tpu_custom_call.1} parent=11 // pred_fallthru
          _
        // Predicated region
        $region17: #{tpu_custom_call.1} parent=11 // pred_check
          %p181 = pneg %p84
        $region18: #{tpu_custom_call.1} parent=11 // pred_check_branch
          %183 = sbr.rel (%p181) target = $region20
        $region19: #{tpu_custom_call.1} parent=11 // pred_region
          %185 = vsyncadd [#allocation7], 0
          %s186 = sshll.u32 %s2, 4
          %s187 = int_to_ptr.hbm [resolvable:$true] %s186
          %s188 = sshll.u32 [#allocation6], 4
          %s189 = int_to_ptr.vmem [resolvable:$true] %s188
          %194 = dma.hbm_to_vmem [thread:$0]  %s187, 512, %s189, [#allocation7], 128, 128, 8
        $region20: #{tpu_custom_call.1} parent=11 // pred_fallthru
          _
        // Predicated region
        $region21: #{tpu_custom_call.1} parent=11 // pred_check
          %p195 = pneg %p105
        $region22: #{tpu_custom_call.1} parent=11 // pred_check_branch
          %197 = sbr.rel (%p195) target = $region24
        $region23: #{tpu_custom_call.1} parent=11 // pred_region
          _
        $region24: #{tpu_custom_call.1} parent=11 // pred_fallthru
          _
        // Predicated region
        $region25: #{tpu_custom_call.1} parent=11 // pred_check
          %p198 = pneg %p126
        $region26: #{tpu_custom_call.1} parent=11 // pred_check_branch
          %200 = sbr.rel (%p198) target = $region28
        $region27: #{tpu_custom_call.1} parent=11 // pred_region
          _
        $region28: #{tpu_custom_call.1} parent=11 // pred_fallthru
          _
      $region12: #{tpu_custom_call.1} parent=5 // pred_fallthru
        _
      %p201 = scmp.lt.s32.totalorder %s16, 2
      // Predicated region
      $region29: #{tpu_custom_call.1} parent=5 // pred_check
        %p202 = pneg %p201
      $region30: #{tpu_custom_call.1} parent=5 // pred_check_branch
        %204 = sbr.rel (%p202) target = $region32
      $region31: #{tpu_custom_call.1} parent=5 // pred_region
        // Predicated region
        $region33: #{tpu_custom_call.1} parent=31 // pred_check
          %p205 = pneg %p36
        $region34: #{tpu_custom_call.1} parent=31 // pred_check_branch
          %207 = sbr.rel (%p205) target = $region36
        $region35: #{tpu_custom_call.1} parent=31 // pred_region
          %s208 = sand.u32 %s26, 1
          %s209 = sand.u32 %s26, 1
          %s210 = smul.addr %s209, 32
          %s211 = scalar_lea.vmem [#allocation2], %s210
          %s212 = smul.addr %s16, 8
          %s213 = scalar_lea.vmem %s0, %s212
          // Predicated region
          $region37: #{tpu_custom_call.1} parent=35 // pred_check
            _
          $region38: #{tpu_custom_call.1} parent=35 // pred_check_branch
            %215 = sbr.rel (0) target = $region40
          $region39: #{tpu_custom_call.1} parent=35 // pred_region
            // Predicated region
            $region41: #{tpu_custom_call.1} parent=39 // pred_check
              _
            $region42: #{tpu_custom_call.1} parent=39 // pred_check_branch
              %217 = sbr.rel (0) target = $region44
            $region43: #{tpu_custom_call.1} parent=39 // pred_region
              // Predicated region
              $region56: #{tpu_custom_call.1} parent=43 // pred_check
                _
              $region57: #{tpu_custom_call.1} parent=43 // pred_check_branch
                %239 = sbr.rel (0) target = $region59
              $region58: #{tpu_custom_call.1} parent=43 // pred_region
                loop: start=0, step=1, limit=1
                $region60: #{tpu_custom_call.1} parent=58 // loop_pre_header
                  _
                $region61: #{tpu_custom_call.1} parent=58 // loop_header
                  %s241 = sphi 0, %s245
                  %p242 = scmp.ge.s32.totalorder %s241, 1
                  %s246 = sphi %s213, %s213
                  %s247 = sphi %s211, %s211
                $region62: #{tpu_custom_call.1} parent=58 // loop_header_branch
                  %244 = sbr.rel (%p242) target = $region66
                $region63: #{tpu_custom_call.1} parent=58 // loop_body
                  %v248 = vld [vmem:[%s246] sm:$0xff]
                  %249 = vst [vmem:[%s247] sm:$0xff] %v248
                  %v250 = vld [vmem:[%s246 + $0x10] sm:$0xff]
                  %251 = vst [vmem:[%s247 + $0x8] sm:$0xff] %v250
                  %v252 = vld [vmem:[%s246 + $0x20] sm:$0xff]
                  %253 = vst [vmem:[%s247 + $0x10] sm:$0xff] %v252
                  %v254 = vld [vmem:[%s246 + $0x30] sm:$0xff]
                  %255 = vst [vmem:[%s247 + $0x18] sm:$0xff] %v254
                $region64: #{tpu_custom_call.1} parent=58 // loop_footer
                  %s245 = sadd.s32 1, %s241
                $region65: #{tpu_custom_call.1} parent=58 // loop_footer_branch
                  %240 = sbr.rel target = $region61
                $region66: #{tpu_custom_call.1} parent=58 // loop_exit
                  _
              $region59: #{tpu_custom_call.1} parent=43 // pred_fallthru
                _
              // Predicated region
              $region67: #{tpu_custom_call.1} parent=43 // pred_check
                _
              $region68: #{tpu_custom_call.1} parent=43 // pred_check_branch
                %257 = sbr.rel target = $region70
              $region69: #{tpu_custom_call.1} parent=43 // pred_region
                _
              $region70: #{tpu_custom_call.1} parent=43 // pred_fallthru
                _
            $region44: #{tpu_custom_call.1} parent=39 // pred_fallthru
              _
            // Predicated region
            $region45: #{tpu_custom_call.1} parent=39 // pred_check
              _
            $region46: #{tpu_custom_call.1} parent=39 // pred_check_branch
              %219 = sbr.rel target = $region48
            $region47: #{tpu_custom_call.1} parent=39 // pred_region
              %s221 = ssub.s32 256, 1
              loop: start=0, step=1, limit=1
              $region49: #{tpu_custom_call.1} parent=47 // loop_pre_header
                _
              $region50: #{tpu_custom_call.1} parent=47 // loop_header
                %s223 = sphi 0, %s227
                %p224 = scmp.ge.s32.totalorder %s223, 1
                %s228 = sphi %s213, %s213
                %s229 = sphi %s211, %s211
              $region51: #{tpu_custom_call.1} parent=47 // loop_header_branch
                %226 = sbr.rel (%p224) target = $region55
              $region52: #{tpu_custom_call.1} parent=47 // loop_body
                %v230 = vld [vmem:[%s228] sm:%s221]
                %231 = vst [vmem:[%s229] sm:%s221] %v230
                %v232 = vld [vmem:[%s228 + $0x10] sm:%s221]
                %233 = vst [vmem:[%s229 + $0x8] sm:%s221] %v232
                %v234 = vld [vmem:[%s228 + $0x20] sm:%s221]
                %235 = vst [vmem:[%s229 + $0x10] sm:%s221] %v234
                %v236 = vld [vmem:[%s228 + $0x30] sm:%s221]
                %237 = vst [vmem:[%s229 + $0x18] sm:%s221] %v236
              $region53: #{tpu_custom_call.1} parent=47 // loop_footer
                %s227 = sadd.s32 1, %s223
              $region54: #{tpu_custom_call.1} parent=47 // loop_footer_branch
                %222 = sbr.rel target = $region50
              $region55: #{tpu_custom_call.1} parent=47 // loop_exit
                _
            $region48: #{tpu_custom_call.1} parent=39 // pred_fallthru
              _
          $region40: #{tpu_custom_call.1} parent=35 // pred_fallthru
            _
          %258 = vnop
        $region36: #{tpu_custom_call.1} parent=31 // pred_fallthru
          _
      $region32: #{tpu_custom_call.1} parent=5 // pred_fallthru
        _
      %p259 = scmp.le.s32.totalorder 1, %s16
      %p260 = scmp.lt.s32.totalorder %s16, 3
      %p261 = pnand %p259, %p260
      %p262 = pneg %p261
      // Predicated region
      $region71: #{tpu_custom_call.1} parent=5 // pred_check
        _
      $region72: #{tpu_custom_call.1} parent=5 // pred_check_branch
        %264 = sbr.rel (%p261) target = $region74
      $region73: #{tpu_custom_call.1} parent=5 // pred_region
        %s265 = ssub.s32 %s16, 1
        %s266 = sand.u32 %s29, 1
        %s267 = sand.u32 %s29, 1
        %s268 = smul.addr %s267, 32
        %s269 = scalar_lea.vmem [#allocation2], %s268
        // Predicated region
        $region75: #{tpu_custom_call.1} parent=73 // pred_check
          %p270 = pneg %p42
        $region76: #{tpu_custom_call.1} parent=73 // pred_check_branch
          %272 = sbr.rel (%p270) target = $region78
        $region77: #{tpu_custom_call.1} parent=73 // pred_region
          _
        $region78: #{tpu_custom_call.1} parent=73 // pred_fallthru
          _
        // Predicated region
        $region79: #{tpu_custom_call.1} parent=73 // pred_check
          %p273 = pneg %p63
        $region80: #{tpu_custom_call.1} parent=73 // pred_check_branch
          %275 = sbr.rel (%p273) target = $region82
        $region81: #{tpu_custom_call.1} parent=73 // pred_region
          %277 = dma.done [#allocation4], 512
        $region82: #{tpu_custom_call.1} parent=73 // pred_fallthru
          _
        // Predicated region
        $region83: #{tpu_custom_call.1} parent=73 // pred_check
          %p278 = pneg %p84
        $region84: #{tpu_custom_call.1} parent=73 // pred_check_branch
          %280 = sbr.rel (%p278) target = $region86
        $region85: #{tpu_custom_call.1} parent=73 // pred_region
          %282 = dma.done [#allocation7], 512
        $region86: #{tpu_custom_call.1} parent=73 // pred_fallthru
          _
        %s283 = sand.u32 %s29, 1
        %s284 = sand.u32 %s29, 1
        %s285 = smul.addr %s284, 32
        %s286 = scalar_lea.vmem [#allocation2], %s285
        %p287 = pneg %p42
        %p288 = pneg %p39
        %p289 = pneg %p63
        %p290 = pneg %p60
        %p291 = pneg %p84
        %p292 = pneg %p81
        %p293 = pneg %p105
        %p294 = pneg %p102
        %p295 = pneg %p126
        %p296 = pneg %p123
        %p297 = pneg %p152
        %p298 = pneg %p149
        %s299 = sand.u32 %s139, 1
        %s300 = scalar_lea.sflag [#allocation5], %s299
        %s301 = sand.u32 %s139, 1
        %s302 = smul.addr %s301, 32
        %s303 = scalar_lea.vmem [#allocation8], %s302
        %v304 = vld [vmem:[%s269] sm:$0xff]
        %v305 = vld [vmem:[%s269 + $0x8] sm:$0xff]
        %v306 = vld [vmem:[%s269 + $0x10] sm:$0xff]
        %v307 = vld [vmem:[%s269 + $0x18] sm:$0xff]
        %v308 = vld [vmem:[#allocation3] sm:$0xff]
        %v309 = vld [vmem:[#allocation3 + $0x8] sm:$0xff]
        %v310 = vld [vmem:[#allocation3 + $0x10] sm:$0xff]
        %v311 = vld [vmem:[#allocation3 + $0x18] sm:$0xff]
        %v312 = vld [vmem:[#allocation6] sm:$0xff]
        %v313 = vld [vmem:[#allocation6 + $0x8] sm:$0xff]
        %v314 = vld [vmem:[#allocation6 + $0x10] sm:$0xff]
        %v315 = vld [vmem:[#allocation6 + $0x18] sm:$0xff]
        %v316 = vld [vmem:[%s3] sm:$0xff]
        %v317 = vld [vmem:[%s3 + $0x8] sm:$0xff]
        %v318 = vld [vmem:[%s3 + $0x10] sm:$0xff]
        %v319 = vld [vmem:[%s3 + $0x18] sm:$0xff]
        %v320 = vld [vmem:[%s4] sm:$0xff]
        %v321 = vld [vmem:[%s4 + $0x8] sm:$0xff]
        %v322 = vld [vmem:[%s4 + $0x10] sm:$0xff]
        %v323 = vld [vmem:[%s4 + $0x18] sm:$0xff]
        %vm324 = vcmask 261120
        %v326 = vsel %vm324, %v308, 0
        %v329 = vsel %vm324, %v309, 0
        %v332 = vsel %vm324, %v310, 0
        %v335 = vsel %vm324, %v311, 0
        %337 = vmatpush.msra.mxu0 0.0
        %338 = vmatpush.msra.mxu0 0.0
        %339 = vmatpush.msra.mxu0 0.0
        %340 = vmatpush.msra.mxu0 0.0
        %341 = vmatpush.msra.mxu0 0.0
        %342 = vmatpush.msra.mxu0 0.0
        %343 = vmatpush.msra.mxu0 0.0
        %344 = vmatpush.msra.mxu0 0.0
        %345 = vmatpush.msra.mxu0 0.0
        %346 = vmatpush.msra.mxu0 0.0
        %347 = vmatpush.msra.mxu0 0.0
        %348 = vmatpush.msra.mxu0 0.0
        %349 = vmatpush.msra.mxu0 %v307
        %350 = vmatpush.msra.mxu0 %v306
        %351 = vmatpush.msra.mxu0 %v305
        %352 = vmatpush.msra.mxu0 %v304
        %353 = vmatmul.f32.gmra.mxu0 %v326
        %v354 = vpop.f32.mrf.mxu0
        %v355 = vadd.f32 0.0, %v354
        %356 = vmatmul.f32.gmra.mxu0 %v329
        %v357 = vpop.f32.mrf.mxu0
        %v358 = vadd.f32 0.0, %v357
        %359 = vmatmul.f32.gmra.mxu0 %v332
        %v360 = vpop.f32.mrf.mxu0
        %v361 = vadd.f32 0.0, %v360
        %362 = vmatmul.f32.gmra.mxu0 %v335
        %v363 = vpop.f32.mrf.mxu0
        %v364 = vadd.f32 0.0, %v363
        %365 = vdwg.mxu0
        %v366 = vlaneseq
        %v367 = vshrl.u32 %v366, 7
        %v368 = vadd.s32 %v367, 8
        %v369 = vadd.s32 %v367, 16
        %v370 = vadd.s32 %v367, 24
        %v371 = vlaneseq
        %v372 = vand.u32 %v371, 127
        %vm373 = vcmp.eq.s32.totalorder %v367, %v372
        %vm374 = vcmp.eq.s32.totalorder %v368, %v372
        %vm375 = vcmp.eq.s32.totalorder %v369, %v372
        %vm376 = vcmp.eq.s32.totalorder %v370, %v372
        %v377 = vsel %vm373, 1, 0
        %v378 = vsel %vm374, 1, 0
        %v379 = vsel %vm375, 1, 0
        %v380 = vsel %vm376, 1, 0
        %v381 = vcvt.s32.f32 %v377
        %v382 = vcvt.s32.f32 %v378
        %v383 = vcvt.s32.f32 %v379
        %v384 = vcvt.s32.f32 %v380
        %v385 = vmul.f32 %v381, 3.0
        %v386 = vmul.f32 %v382, 3.0
        %v387 = vmul.f32 %v383, 3.0
        %v388 = vmul.f32 %v384, 3.0
        %389 = vadd.xlane.f32.xlu0 %v355
        %v390 = vpop.xlane.xlu0 %389
        %391 = vadd.xlane.f32.xlu0 %v358
        %v392 = vpop.xlane.xlu0 %391
        %393 = vadd.xlane.f32.xlu0 %v361
        %v394 = vpop.xlane.xlu0 %393
        %395 = vadd.xlane.f32.xlu0 %v364
        %v396 = vpop.xlane.xlu0 %395
        %v397 = vmul.f32 %v390, 0.0078125
        %v398 = vmul.f32 %v392, 0.0078125
        %v399 = vmul.f32 %v394, 0.0078125
        %v400 = vmul.f32 %v396, 0.0078125
        %v401 = vsub.f32 %v355, %v397
        %v402 = vsub.f32 %v358, %v398
        %v403 = vsub.f32 %v361, %v399
        %v404 = vsub.f32 %v364, %v400
        %405 = vmatpush.xpose.msra.mxu0 0.0
        %406 = vmatpush.xpose.msra.mxu0 0.0
        %407 = vmatpush.xpose.msra.mxu0 0.0
        %408 = vmatpush.xpose.msra.mxu0 0.0
        %409 = vmatpush.xpose.msra.mxu0 0.0
        %410 = vmatpush.xpose.msra.mxu0 0.0
        %411 = vmatpush.xpose.msra.mxu0 0.0
        %412 = vmatpush.xpose.msra.mxu0 0.0
        %413 = vmatpush.xpose.msra.mxu0 0.0
        %414 = vmatpush.xpose.msra.mxu0 0.0
        %415 = vmatpush.xpose.msra.mxu0 0.0
        %416 = vmatpush.xpose.msra.mxu0 0.0
        %417 = vmatpush.xpose.msra.mxu0 %v404
        %418 = vmatpush.xpose.msra.mxu0 %v403
        %419 = vmatpush.xpose.msra.mxu0 %v402
        %420 = vmatpush.xpose.msra.mxu0 %v401
        %421 = vmatmul.f32.gmra.mxu0 %v401
        %v422 = vpop.f32.mrf.mxu0
        %v423 = vadd.f32 0.0, %v422
        %424 = vmatmul.f32.gmra.mxu0 %v402
        %v425 = vpop.f32.mrf.mxu0
        %v426 = vadd.f32 0.0, %v425
        %427 = vmatmul.f32.gmra.mxu0 %v403
        %v428 = vpop.f32.mrf.mxu0
        %v429 = vadd.f32 0.0, %v428
        %430 = vmatmul.f32.gmra.mxu0 %v404
        %v431 = vpop.f32.mrf.mxu0
        %v432 = vadd.f32 0.0, %v431
        %433 = vdwg.mxu0
        %v434 = vmul.f32 %v423, 0.0078125
        %v435 = vmul.f32 %v426, 0.0078125
        %v436 = vmul.f32 %v429, 0.0078125
        %v437 = vmul.f32 %v432, 0.0078125
        %v438 = vmul.f32 %v434, %v312
        %v439 = vmul.f32 %v435, %v313
        %v440 = vmul.f32 %v436, %v314
        %v441 = vmul.f32 %v437, %v315
        %v442 = vmul.f32 %v401, %v401
        %v443 = vmul.f32 %v402, %v402
        %v444 = vmul.f32 %v403, %v403
        %v445 = vmul.f32 %v404, %v404
        %v447 = vsel %vm324, %v312, 0
        %v450 = vsel %vm324, %v313, 0
        %v453 = vsel %vm324, %v314, 0
        %v456 = vsel %vm324, %v315, 0
        %458 = vmatpush.msra.mxu0 0.0
        %459 = vmatpush.msra.mxu0 0.0
        %460 = vmatpush.msra.mxu0 0.0
        %461 = vmatpush.msra.mxu0 0.0
        %462 = vmatpush.msra.mxu0 0.0
        %463 = vmatpush.msra.mxu0 0.0
        %464 = vmatpush.msra.mxu0 0.0
        %465 = vmatpush.msra.mxu0 0.0
        %466 = vmatpush.msra.mxu0 0.0
        %467 = vmatpush.msra.mxu0 0.0
        %468 = vmatpush.msra.mxu0 0.0
        %469 = vmatpush.msra.mxu0 0.0
        %470 = vmatpush.msra.mxu0 %v445
        %471 = vmatpush.msra.mxu0 %v444
        %472 = vmatpush.msra.mxu0 %v443
        %473 = vmatpush.msra.mxu0 %v442
        %474 = vmatmul.f32.gmra.mxu0 %v447
        %v475 = vpop.f32.mrf.mxu0
        %v476 = vadd.f32 0.0, %v475
        %477 = vmatmul.f32.gmra.mxu0 %v450
        %v478 = vpop.f32.mrf.mxu0
        %v479 = vadd.f32 0.0, %v478
        %480 = vmatmul.f32.gmra.mxu0 %v453
        %v481 = vpop.f32.mrf.mxu0
        %v482 = vadd.f32 0.0, %v481
        %483 = vmatmul.f32.gmra.mxu0 %v456
        %v484 = vpop.f32.mrf.mxu0
        %v485 = vadd.f32 0.0, %v484
        %486 = vdwg.mxu0
        %487 = vadd.xlane.f32.xlu0 %v476
        %v488 = vpop.xlane.xlu0 %487
        %489 = vadd.xlane.f32.xlu0 %v479
        %v490 = vpop.xlane.xlu0 %489
        %491 = vadd.xlane.f32.xlu0 %v482
        %v492 = vpop.xlane.xlu0 %491
        %493 = vadd.xlane.f32.xlu0 %v485
        %v494 = vpop.xlane.xlu0 %493
        %v495 = vmul.f32 %v488, 0.0078125
        %v496 = vmul.f32 %v490, 0.0078125
        %v497 = vmul.f32 %v492, 0.0078125
        %v498 = vmul.f32 %v494, 0.0078125
        %v499 = vadd.f32 %v495, 1e-12
        %v500 = vadd.f32 %v496, 1e-12
        %v501 = vadd.f32 %v497, 1e-12
        %v502 = vadd.f32 %v498, 1e-12
        %v503 = vrcp.pop %v499
        %v504 = vmul.f32 %v499, %v503
        %v505 = vsub.f32 1.0, %v504
        %v506 = vmul.f32 %v503, %v505
        %v507 = vadd.f32 %v503, %v506
        %vm508 = vweird.f32 %v499
        %vm509 = vweird.f32 %v503
        %vm510 = vmor %vm508, %vm509
        %v511 = vsel %vm510, %v503, %v507
        %v512 = vand.u32 2147483647, %v499
        %vm513 = vcmp.eq.f32.partialorder %v512, 8.507059e+37
        %v514 = vand.u32 %v499, 2147483648
        %v515 = vor.u32 1.1754944e-38, %v514
        %v516 = vsel %vm513, %v515, %v511
        %v517 = vmul.f32 %v438, %v516
        %v518 = vrcp.pop %v500
        %v519 = vmul.f32 %v500, %v518
        %v520 = vsub.f32 1.0, %v519
        %v521 = vmul.f32 %v518, %v520
        %v522 = vadd.f32 %v518, %v521
        %vm523 = vweird.f32 %v500
        %vm524 = vweird.f32 %v518
        %vm525 = vmor %vm523, %vm524
        %v526 = vsel %vm525, %v518, %v522
        %v527 = vand.u32 2147483647, %v500
        %vm528 = vcmp.eq.f32.partialorder %v527, 8.507059e+37
        %v529 = vand.u32 %v500, 2147483648
        %v530 = vor.u32 1.1754944e-38, %v529
        %v531 = vsel %vm528, %v530, %v526
        %v532 = vmul.f32 %v439, %v531
        %v533 = vrcp.pop %v501
        %v534 = vmul.f32 %v501, %v533
        %v535 = vsub.f32 1.0, %v534
        %v536 = vmul.f32 %v533, %v535
        %v537 = vadd.f32 %v533, %v536
        %vm538 = vweird.f32 %v501
        %vm539 = vweird.f32 %v533
        %vm540 = vmor %vm538, %vm539
        %v541 = vsel %vm540, %v533, %v537
        %v542 = vand.u32 2147483647, %v501
        %vm543 = vcmp.eq.f32.partialorder %v542, 8.507059e+37
        %v544 = vand.u32 %v501, 2147483648
        %v545 = vor.u32 1.1754944e-38, %v544
        %v546 = vsel %vm543, %v545, %v541
        %v547 = vmul.f32 %v440, %v546
        %v548 = vrcp.pop %v502
        %v549 = vmul.f32 %v502, %v548
        %v550 = vsub.f32 1.0, %v549
        %v551 = vmul.f32 %v548, %v550
        %v552 = vadd.f32 %v548, %v551
        %vm553 = vweird.f32 %v502
        %vm554 = vweird.f32 %v548
        %vm555 = vmor %vm553, %vm554
        %v556 = vsel %vm555, %v548, %v552
        %v557 = vand.u32 2147483647, %v502
        %vm558 = vcmp.eq.f32.partialorder %v557, 8.507059e+37
        %v559 = vand.u32 %v502, 2147483648
        %v560 = vor.u32 1.1754944e-38, %v559
        %v561 = vsel %vm558, %v560, %v556
        %v562 = vmul.f32 %v441, %v561
        %v563 = vsub.f32 %v385, %v517
        %v564 = vsub.f32 %v386, %v532
        %v565 = vsub.f32 %v387, %v547
        %v566 = vsub.f32 %v388, %v562
        %v567 = vmul.f32 %v563, 0.5
        %v568 = vmul.f32 %v564, 0.5
        %v569 = vmul.f32 %v565, 0.5
        %v570 = vmul.f32 %v566, 0.5
        %v572 = vsel %vm324, %v517, 0
        %v575 = vsel %vm324, %v532, 0
        %v578 = vsel %vm324, %v547, 0
        %v581 = vsel %vm324, %v562, 0
        %583 = vmatpush.msra.mxu0 0.0
        %584 = vmatpush.msra.mxu0 0.0
        %585 = vmatpush.msra.mxu0 0.0
        %586 = vmatpush.msra.mxu0 0.0
        %587 = vmatpush.msra.mxu0 0.0
        %588 = vmatpush.msra.mxu0 0.0
        %589 = vmatpush.msra.mxu0 0.0
        %590 = vmatpush.msra.mxu0 0.0
        %591 = vmatpush.msra.mxu0 0.0
        %592 = vmatpush.msra.mxu0 0.0
        %593 = vmatpush.msra.mxu0 0.0
        %594 = vmatpush.msra.mxu0 0.0
        %595 = vmatpush.msra.mxu0 %v570
        %596 = vmatpush.msra.mxu0 %v569
        %597 = vmatpush.msra.mxu0 %v568
        %598 = vmatpush.msra.mxu0 %v567
        %599 = vmatmul.f32.gmra.mxu0 %v572
        %v600 = vpop.f32.mrf.mxu0
        %v601 = vadd.f32 0.0, %v600
        %602 = vmatmul.f32.gmra.mxu0 %v575
        %v603 = vpop.f32.mrf.mxu0
        %v604 = vadd.f32 0.0, %v603
        %605 = vmatmul.f32.gmra.mxu0 %v578
        %v606 = vpop.f32.mrf.mxu0
        %v607 = vadd.f32 0.0, %v606
        %608 = vmatmul.f32.gmra.mxu0 %v581
        %v609 = vpop.f32.mrf.mxu0
        %v610 = vadd.f32 0.0, %v609
        %611 = vdwg.mxu0
        %v613 = vsel %vm324, %v567, 0
        %v616 = vsel %vm324, %v568, 0
        %v619 = vsel %vm324, %v569, 0
        %v622 = vsel %vm324, %v570, 0
        %624 = vmatpush.msra.mxu0 0.0
        %625 = vmatpush.msra.mxu0 0.0
        %626 = vmatpush.msra.mxu0 0.0
        %627 = vmatpush.msra.mxu0 0.0
        %628 = vmatpush.msra.mxu0 0.0
        %629 = vmatpush.msra.mxu0 0.0
        %630 = vmatpush.msra.mxu0 0.0
        %631 = vmatpush.msra.mxu0 0.0
        %632 = vmatpush.msra.mxu0 0.0
        %633 = vmatpush.msra.mxu0 0.0
        %634 = vmatpush.msra.mxu0 0.0
        %635 = vmatpush.msra.mxu0 0.0
        %636 = vmatpush.msra.mxu0 %v610
        %637 = vmatpush.msra.mxu0 %v607
        %638 = vmatpush.msra.mxu0 %v604
        %639 = vmatpush.msra.mxu0 %v601
        %640 = vmatmul.f32.gmra.mxu0 %v613
        %v641 = vpop.f32.mrf.mxu0
        %v642 = vadd.f32 0.0, %v641
        %643 = vmatmul.f32.gmra.mxu0 %v616
        %v644 = vpop.f32.mrf.mxu0
        %v645 = vadd.f32 0.0, %v644
        %646 = vmatmul.f32.gmra.mxu0 %v619
        %v647 = vpop.f32.mrf.mxu0
        %v648 = vadd.f32 0.0, %v647
        %649 = vmatmul.f32.gmra.mxu0 %v622
        %v650 = vpop.f32.mrf.mxu0
        %v651 = vadd.f32 0.0, %v650
        %652 = vdwg.mxu0
        %v653 = vsub.f32 %v385, %v642
        %v654 = vsub.f32 %v386, %v645
        %v655 = vsub.f32 %v387, %v648
        %v656 = vsub.f32 %v388, %v651
        %v657 = vmul.f32 %v653, 0.5
        %v658 = vmul.f32 %v654, 0.5
        %v659 = vmul.f32 %v655, 0.5
        %v660 = vmul.f32 %v656, 0.5
        %v662 = vsel %vm324, %v601, 0
        %v665 = vsel %vm324, %v604, 0
        %v668 = vsel %vm324, %v607, 0
        %v671 = vsel %vm324, %v610, 0
        %673 = vmatpush.msra.mxu0 0.0
        %674 = vmatpush.msra.mxu0 0.0
        %675 = vmatpush.msra.mxu0 0.0
        %676 = vmatpush.msra.mxu0 0.0
        %677 = vmatpush.msra.mxu0 0.0
        %678 = vmatpush.msra.mxu0 0.0
        %679 = vmatpush.msra.mxu0 0.0
        %680 = vmatpush.msra.mxu0 0.0
        %681 = vmatpush.msra.mxu0 0.0
        %682 = vmatpush.msra.mxu0 0.0
        %683 = vmatpush.msra.mxu0 0.0
        %684 = vmatpush.msra.mxu0 0.0
        %685 = vmatpush.msra.mxu0 %v660
        %686 = vmatpush.msra.mxu0 %v659
        %687 = vmatpush.msra.mxu0 %v658
        %688 = vmatpush.msra.mxu0 %v657
        %689 = vmatmul.f32.gmra.mxu0 %v662
        %v690 = vpop.f32.mrf.mxu0
        %v691 = vadd.f32 0.0, %v690
        %692 = vmatmul.f32.gmra.mxu0 %v665
        %v693 = vpop.f32.mrf.mxu0
        %v694 = vadd.f32 0.0, %v693
        %695 = vmatmul.f32.gmra.mxu0 %v668
        %v696 = vpop.f32.mrf.mxu0
        %v697 = vadd.f32 0.0, %v696
        %698 = vmatmul.f32.gmra.mxu0 %v671
        %v699 = vpop.f32.mrf.mxu0
        %v700 = vadd.f32 0.0, %v699
        %701 = vdwg.mxu0
        %v703 = vsel %vm324, %v657, 0
        %v706 = vsel %vm324, %v658, 0
        %v709 = vsel %vm324, %v659, 0
        %v712 = vsel %vm324, %v660, 0
        %714 = vmatpush.msra.mxu0 0.0
        %715 = vmatpush.msra.mxu0 0.0
        %716 = vmatpush.msra.mxu0 0.0
        %717 = vmatpush.msra.mxu0 0.0
        %718 = vmatpush.msra.mxu0 0.0
        %719 = vmatpush.msra.mxu0 0.0
        %720 = vmatpush.msra.mxu0 0.0
        %721 = vmatpush.msra.mxu0 0.0
        %722 = vmatpush.msra.mxu0 0.0
        %723 = vmatpush.msra.mxu0 0.0
        %724 = vmatpush.msra.mxu0 0.0
        %725 = vmatpush.msra.mxu0 0.0
        %726 = vmatpush.msra.mxu0 %v570
        %727 = vmatpush.msra.mxu0 %v569
        %728 = vmatpush.msra.mxu0 %v568
        %729 = vmatpush.msra.mxu0 %v567
        %730 = vmatmul.f32.gmra.mxu0 %v703
        %v731 = vpop.f32.mrf.mxu0
        %v732 = vadd.f32 0.0, %v731
        %733 = vmatmul.f32.gmra.mxu0 %v706
        %v734 = vpop.f32.mrf.mxu0
        %v735 = vadd.f32 0.0, %v734
        %736 = vmatmul.f32.gmra.mxu0 %v709
        %v737 = vpop.f32.mrf.mxu0
        %v738 = vadd.f32 0.0, %v737
        %739 = vmatmul.f32.gmra.mxu0 %v712
        %v740 = vpop.f32.mrf.mxu0
        %v741 = vadd.f32 0.0, %v740
        %742 = vdwg.mxu0
        %v744 = vsel %vm324, %v732, 0
        %v747 = vsel %vm324, %v735, 0
        %v750 = vsel %vm324, %v738, 0
        %v753 = vsel %vm324, %v741, 0
        %755 = vmatpush.msra.mxu0 0.0
        %756 = vmatpush.msra.mxu0 0.0
        %757 = vmatpush.msra.mxu0 0.0
        %758 = vmatpush.msra.mxu0 0.0
        %759 = vmatpush.msra.mxu0 0.0
        %760 = vmatpush.msra.mxu0 0.0
        %761 = vmatpush.msra.mxu0 0.0
        %762 = vmatpush.msra.mxu0 0.0
        %763 = vmatpush.msra.mxu0 0.0
        %764 = vmatpush.msra.mxu0 0.0
        %765 = vmatpush.msra.mxu0 0.0
        %766 = vmatpush.msra.mxu0 0.0
        %767 = vmatpush.msra.mxu0 %v700
        %768 = vmatpush.msra.mxu0 %v697
        %769 = vmatpush.msra.mxu0 %v694
        %770 = vmatpush.msra.mxu0 %v691
        %771 = vmatmul.f32.gmra.mxu0 %v744
        %v772 = vpop.f32.mrf.mxu0
        %v773 = vadd.f32 0.0, %v772
        %774 = vmatmul.f32.gmra.mxu0 %v747
        %v775 = vpop.f32.mrf.mxu0
        %v776 = vadd.f32 0.0, %v775
        %777 = vmatmul.f32.gmra.mxu0 %v750
        %v778 = vpop.f32.mrf.mxu0
        %v779 = vadd.f32 0.0, %v778
        %780 = vmatmul.f32.gmra.mxu0 %v753
        %v781 = vpop.f32.mrf.mxu0
        %v782 = vadd.f32 0.0, %v781
        %783 = vdwg.mxu0
        %v784 = vsub.f32 %v385, %v773
        %v785 = vsub.f32 %v386, %v776
        %v786 = vsub.f32 %v387, %v779
        %v787 = vsub.f32 %v388, %v782
        %v788 = vmul.f32 %v784, 0.5
        %v789 = vmul.f32 %v785, 0.5
        %v790 = vmul.f32 %v786, 0.5
        %v791 = vmul.f32 %v787, 0.5
        %v793 = vsel %vm324, %v691, 0
        %v796 = vsel %vm324, %v694, 0
        %v799 = vsel %vm324, %v697, 0
        %v802 = vsel %vm324, %v700, 0
        %804 = vmatpush.msra.mxu0 0.0
        %805 = vmatpush.msra.mxu0 0.0
        %806 = vmatpush.msra.mxu0 0.0
        %807 = vmatpush.msra.mxu0 0.0
        %808 = vmatpush.msra.mxu0 0.0
        %809 = vmatpush.msra.mxu0 0.0
        %810 = vmatpush.msra.mxu0 0.0
        %811 = vmatpush.msra.mxu0 0.0
        %812 = vmatpush.msra.mxu0 0.0
        %813 = vmatpush.msra.mxu0 0.0
        %814 = vmatpush.msra.mxu0 0.0
        %815 = vmatpush.msra.mxu0 0.0
        %816 = vmatpush.msra.mxu0 %v791
        %817 = vmatpush.msra.mxu0 %v790
        %818 = vmatpush.msra.mxu0 %v789
        %819 = vmatpush.msra.mxu0 %v788
        %820 = vmatmul.f32.gmra.mxu0 %v793
        %v821 = vpop.f32.mrf.mxu0
        %v822 = vadd.f32 0.0, %v821
        %823 = vmatmul.f32.gmra.mxu0 %v796
        %v824 = vpop.f32.mrf.mxu0
        %v825 = vadd.f32 0.0, %v824
        %826 = vmatmul.f32.gmra.mxu0 %v799
        %v827 = vpop.f32.mrf.mxu0
        %v828 = vadd.f32 0.0, %v827
        %829 = vmatmul.f32.gmra.mxu0 %v802
        %v830 = vpop.f32.mrf.mxu0
        %v831 = vadd.f32 0.0, %v830
        %832 = vdwg.mxu0
        %v834 = vsel %vm324, %v788, 0
        %v837 = vsel %vm324, %v789, 0
        %v840 = vsel %vm324, %v790, 0
        %v843 = vsel %vm324, %v791, 0
        %845 = vmatpush.msra.mxu0 0.0
        %846 = vmatpush.msra.mxu0 0.0
        %847 = vmatpush.msra.mxu0 0.0
        %848 = vmatpush.msra.mxu0 0.0
        %849 = vmatpush.msra.mxu0 0.0
        %850 = vmatpush.msra.mxu0 0.0
        %851 = vmatpush.msra.mxu0 0.0
        %852 = vmatpush.msra.mxu0 0.0
        %853 = vmatpush.msra.mxu0 0.0
        %854 = vmatpush.msra.mxu0 0.0
        %855 = vmatpush.msra.mxu0 0.0
        %856 = vmatpush.msra.mxu0 0.0
        %857 = vmatpush.msra.mxu0 %v741
        %858 = vmatpush.msra.mxu0 %v738
        %859 = vmatpush.msra.mxu0 %v735
        %860 = vmatpush.msra.mxu0 %v732
        %861 = vmatmul.f32.gmra.mxu0 %v834
        %v862 = vpop.f32.mrf.mxu0
        %v863 = vadd.f32 0.0, %v862
        %864 = vmatmul.f32.gmra.mxu0 %v837
        %v865 = vpop.f32.mrf.mxu0
        %v866 = vadd.f32 0.0, %v865
        %867 = vmatmul.f32.gmra.mxu0 %v840
        %v868 = vpop.f32.mrf.mxu0
        %v869 = vadd.f32 0.0, %v868
        %870 = vmatmul.f32.gmra.mxu0 %v843
        %v871 = vpop.f32.mrf.mxu0
        %v872 = vadd.f32 0.0, %v871
        %873 = vdwg.mxu0
        %v875 = vsel %vm324, %v863, 0
        %v878 = vsel %vm324, %v866, 0
        %v881 = vsel %vm324, %v869, 0
        %v884 = vsel %vm324, %v872, 0
        %886 = vmatpush.msra.mxu0 0.0
        %887 = vmatpush.msra.mxu0 0.0
        %888 = vmatpush.msra.mxu0 0.0
        %889 = vmatpush.msra.mxu0 0.0
        %890 = vmatpush.msra.mxu0 0.0
        %891 = vmatpush.msra.mxu0 0.0
        %892 = vmatpush.msra.mxu0 0.0
        %893 = vmatpush.msra.mxu0 0.0
        %894 = vmatpush.msra.mxu0 0.0
        %895 = vmatpush.msra.mxu0 0.0
        %896 = vmatpush.msra.mxu0 0.0
        %897 = vmatpush.msra.mxu0 0.0
        %898 = vmatpush.msra.mxu0 %v831
        %899 = vmatpush.msra.mxu0 %v828
        %900 = vmatpush.msra.mxu0 %v825
        %901 = vmatpush.msra.mxu0 %v822
        %902 = vmatmul.f32.gmra.mxu0 %v875
        %v903 = vpop.f32.mrf.mxu0
        %v904 = vadd.f32 0.0, %v903
        %905 = vmatmul.f32.gmra.mxu0 %v878
        %v906 = vpop.f32.mrf.mxu0
        %v907 = vadd.f32 0.0, %v906
        %908 = vmatmul.f32.gmra.mxu0 %v881
        %v909 = vpop.f32.mrf.mxu0
        %v910 = vadd.f32 0.0, %v909
        %911 = vmatmul.f32.gmra.mxu0 %v884
        %v912 = vpop.f32.mrf.mxu0
        %v913 = vadd.f32 0.0, %v912
        %914 = vdwg.mxu0
        %v915 = vsub.f32 %v385, %v904
        %v916 = vsub.f32 %v386, %v907
        %v917 = vsub.f32 %v387, %v910
        %v918 = vsub.f32 %v388, %v913
        %v919 = vmul.f32 %v915, 0.5
        %v920 = vmul.f32 %v916, 0.5
        %v921 = vmul.f32 %v917, 0.5
        %v922 = vmul.f32 %v918, 0.5
        %v924 = vsel %vm324, %v822, 0
        %v927 = vsel %vm324, %v825, 0
        %v930 = vsel %vm324, %v828, 0
        %v933 = vsel %vm324, %v831, 0
        %935 = vmatpush.msra.mxu0 0.0
        %936 = vmatpush.msra.mxu0 0.0
        %937 = vmatpush.msra.mxu0 0.0
        %938 = vmatpush.msra.mxu0 0.0
        %939 = vmatpush.msra.mxu0 0.0
        %940 = vmatpush.msra.mxu0 0.0
        %941 = vmatpush.msra.mxu0 0.0
        %942 = vmatpush.msra.mxu0 0.0
        %943 = vmatpush.msra.mxu0 0.0
        %944 = vmatpush.msra.mxu0 0.0
        %945 = vmatpush.msra.mxu0 0.0
        %946 = vmatpush.msra.mxu0 0.0
        %947 = vmatpush.msra.mxu0 %v922
        %948 = vmatpush.msra.mxu0 %v921
        %949 = vmatpush.msra.mxu0 %v920
        %950 = vmatpush.msra.mxu0 %v919
        %951 = vmatmul.f32.gmra.mxu0 %v924
        %v952 = vpop.f32.mrf.mxu0
        %v953 = vadd.f32 0.0, %v952
        %954 = vmatmul.f32.gmra.mxu0 %v927
        %v955 = vpop.f32.mrf.mxu0
        %v956 = vadd.f32 0.0, %v955
        %957 = vmatmul.f32.gmra.mxu0 %v930
        %v958 = vpop.f32.mrf.mxu0
        %v959 = vadd.f32 0.0, %v958
        %960 = vmatmul.f32.gmra.mxu0 %v933
        %v961 = vpop.f32.mrf.mxu0
        %v962 = vadd.f32 0.0, %v961
        %963 = vdwg.mxu0
        %v965 = vsel %vm324, %v919, 0
        %v968 = vsel %vm324, %v920, 0
        %v971 = vsel %vm324, %v921, 0
        %v974 = vsel %vm324, %v922, 0
        %976 = vmatpush.msra.mxu0 0.0
        %977 = vmatpush.msra.mxu0 0.0
        %978 = vmatpush.msra.mxu0 0.0
        %979 = vmatpush.msra.mxu0 0.0
        %980 = vmatpush.msra.mxu0 0.0
        %981 = vmatpush.msra.mxu0 0.0
        %982 = vmatpush.msra.mxu0 0.0
        %983 = vmatpush.msra.mxu0 0.0
        %984 = vmatpush.msra.mxu0 0.0
        %985 = vmatpush.msra.mxu0 0.0
        %986 = vmatpush.msra.mxu0 0.0
        %987 = vmatpush.msra.mxu0 0.0
        %988 = vmatpush.msra.mxu0 %v872
        %989 = vmatpush.msra.mxu0 %v869
        %990 = vmatpush.msra.mxu0 %v866
        %991 = vmatpush.msra.mxu0 %v863
        %992 = vmatmul.f32.gmra.mxu0 %v965
        %v993 = vpop.f32.mrf.mxu0
        %v994 = vadd.f32 0.0, %v993
        %995 = vmatmul.f32.gmra.mxu0 %v968
        %v996 = vpop.f32.mrf.mxu0
        %v997 = vadd.f32 0.0, %v996
        %998 = vmatmul.f32.gmra.mxu0 %v971
        %v999 = vpop.f32.mrf.mxu0
        %v1000 = vadd.f32 0.0, %v999
        %1001 = vmatmul.f32.gmra.mxu0 %v974
        %v1002 = vpop.f32.mrf.mxu0
        %v1003 = vadd.f32 0.0, %v1002
        %1004 = vdwg.mxu0
        %v1006 = vsel %vm324, %v994, 0
        %v1009 = vsel %vm324, %v997, 0
        %v1012 = vsel %vm324, %v1000, 0
        %v1015 = vsel %vm324, %v1003, 0
        %1017 = vmatpush.msra.mxu0 0.0
        %1018 = vmatpush.msra.mxu0 0.0
        %1019 = vmatpush.msra.mxu0 0.0
        %1020 = vmatpush.msra.mxu0 0.0
        %1021 = vmatpush.msra.mxu0 0.0
        %1022 = vmatpush.msra.mxu0 0.0
        %1023 = vmatpush.msra.mxu0 0.0
        %1024 = vmatpush.msra.mxu0 0.0
        %1025 = vmatpush.msra.mxu0 0.0
        %1026 = vmatpush.msra.mxu0 0.0
        %1027 = vmatpush.msra.mxu0 0.0
        %1028 = vmatpush.msra.mxu0 0.0
        %1029 = vmatpush.msra.mxu0 %v962
        %1030 = vmatpush.msra.mxu0 %v959
        %1031 = vmatpush.msra.mxu0 %v956
        %1032 = vmatpush.msra.mxu0 %v953
        %1033 = vmatmul.f32.gmra.mxu0 %v1006
        %v1034 = vpop.f32.mrf.mxu0
        %v1035 = vadd.f32 0.0, %v1034
        %1036 = vmatmul.f32.gmra.mxu0 %v1009
        %v1037 = vpop.f32.mrf.mxu0
        %v1038 = vadd.f32 0.0, %v1037
        %1039 = vmatmul.f32.gmra.mxu0 %v1012
        %v1040 = vpop.f32.mrf.mxu0
        %v1041 = vadd.f32 0.0, %v1040
        %1042 = vmatmul.f32.gmra.mxu0 %v1015
        %v1043 = vpop.f32.mrf.mxu0
        %v1044 = vadd.f32 0.0, %v1043
        %1045 = vdwg.mxu0
        %v1046 = vsub.f32 %v385, %v1035
        %v1047 = vsub.f32 %v386, %v1038
        %v1048 = vsub.f32 %v387, %v1041
        %v1049 = vsub.f32 %v388, %v1044
        %v1051 = vsel %vm324, %v953, 0
        %v1054 = vsel %vm324, %v956, 0
        %v1057 = vsel %vm324, %v959, 0
        %v1060 = vsel %vm324, %v962, 0
        %1062 = vmatpush.msra.mxu0 0.0
        %1063 = vmatpush.msra.mxu0 0.0
        %1064 = vmatpush.msra.mxu0 0.0
        %1065 = vmatpush.msra.mxu0 0.0
        %1066 = vmatpush.msra.mxu0 0.0
        %1067 = vmatpush.msra.mxu0 0.0
        %1068 = vmatpush.msra.mxu0 0.0
        %1069 = vmatpush.msra.mxu0 0.0
        %1070 = vmatpush.msra.mxu0 0.0
        %1071 = vmatpush.msra.mxu0 0.0
        %1072 = vmatpush.msra.mxu0 0.0
        %1073 = vmatpush.msra.mxu0 0.0
        %1074 = vmatpush.msra.mxu0 %v1049
        %1075 = vmatpush.msra.mxu0 %v1048
        %1076 = vmatpush.msra.mxu0 %v1047
        %1077 = vmatpush.msra.mxu0 %v1046
        %1078 = vmatmul.f32.gmra.mxu0 %v1051
        %v1079 = vpop.f32.mrf.mxu0
        %v1080 = vadd.f32 0.0, %v1079
        %1081 = vmatmul.f32.gmra.mxu0 %v1054
        %v1082 = vpop.f32.mrf.mxu0
        %v1083 = vadd.f32 0.0, %v1082
        %1084 = vmatmul.f32.gmra.mxu0 %v1057
        %v1085 = vpop.f32.mrf.mxu0
        %v1086 = vadd.f32 0.0, %v1085
        %1087 = vmatmul.f32.gmra.mxu0 %v1060
        %v1088 = vpop.f32.mrf.mxu0
        %v1089 = vadd.f32 0.0, %v1088
        %1090 = vdwg.mxu0
        %v1091 = vmul.f32 %v1080, 0.5
        %v1092 = vmul.f32 %v1083, 0.5
        %v1093 = vmul.f32 %v1086, 0.5
        %v1094 = vmul.f32 %v1089, 0.5
        %v1095 = vrsqrt.pop %v499
        %v1096 = vmul.f32 %v1095, %v499
        %v1097 = vmul.f32 %v1096, %v1095
        %v1098 = vmul.f32 0.5, %v1097
        %v1099 = vsub.f32 1.5, %v1098
        %v1100 = vmul.f32 %v1095, %v1099
        %v1101 = vmul.f32 %v499, %v1100
        %vm1102 = vcmp.eq.f32.partialorder %v499, inf
        %v1103 = vsel %vm1102, %v499, %v1101
        %vm1104 = vcmp.eq.f32.partialorder %v499, 0.0
        %v1105 = vand.u32 %v499, 2147483648
        %v1106 = vsel %vm1104, %v1105, %v1103
        %v1107 = vrsqrt.pop %v500
        %v1108 = vmul.f32 %v1107, %v500
        %v1109 = vmul.f32 %v1108, %v1107
        %v1110 = vmul.f32 0.5, %v1109
        %v1111 = vsub.f32 1.5, %v1110
        %v1112 = vmul.f32 %v1107, %v1111
        %v1113 = vmul.f32 %v500, %v1112
        %vm1114 = vcmp.eq.f32.partialorder %v500, inf
        %v1115 = vsel %vm1114, %v500, %v1113
        %vm1116 = vcmp.eq.f32.partialorder %v500, 0.0
        %v1117 = vand.u32 %v500, 2147483648
        %v1118 = vsel %vm1116, %v1117, %v1115
        %v1119 = vrsqrt.pop %v501
        %v1120 = vmul.f32 %v1119, %v501
        %v1121 = vmul.f32 %v1120, %v1119
        %v1122 = vmul.f32 0.5, %v1121
        %v1123 = vsub.f32 1.5, %v1122
        %v1124 = vmul.f32 %v1119, %v1123
        %v1125 = vmul.f32 %v501, %v1124
        %vm1126 = vcmp.eq.f32.partialorder %v501, inf
        %v1127 = vsel %vm1126, %v501, %v1125
        %vm1128 = vcmp.eq.f32.partialorder %v501, 0.0
        %v1129 = vand.u32 %v501, 2147483648
        %v1130 = vsel %vm1128, %v1129, %v1127
        %v1131 = vrsqrt.pop %v502
        %v1132 = vmul.f32 %v1131, %v502
        %v1133 = vmul.f32 %v1132, %v1131
        %v1134 = vmul.f32 0.5, %v1133
        %v1135 = vsub.f32 1.5, %v1134
        %v1136 = vmul.f32 %v1131, %v1135
        %v1137 = vmul.f32 %v502, %v1136
        %vm1138 = vcmp.eq.f32.partialorder %v502, inf
        %v1139 = vsel %vm1138, %v502, %v1137
        %vm1140 = vcmp.eq.f32.partialorder %v502, 0.0
        %v1141 = vand.u32 %v502, 2147483648
        %v1142 = vsel %vm1140, %v1141, %v1139
        %v1143 = vmul.f32 %v1091, %v1106
        %v1144 = vmul.f32 %v1092, %v1118
        %v1145 = vmul.f32 %v1093, %v1130
        %v1146 = vmul.f32 %v1094, %v1142
        %v1147 = vsel %vm324, %v1143, 0.0
        %1148 = vadd.xlane.f32.xlu0 %v1147
        %v1149 = vpop.xlane.xlu0 %1148
        %v1150 = vsel %vm324, %v1144, 0.0
        %1151 = vadd.xlane.f32.xlu0 %v1150
        %v1152 = vpop.xlane.xlu0 %1151
        %v1153 = vsel %vm324, %v1145, 0.0
        %1154 = vadd.xlane.f32.xlu0 %v1153
        %v1155 = vpop.xlane.xlu0 %1154
        %v1156 = vsel %vm324, %v1146, 0.0
        %1157 = vadd.xlane.f32.xlu0 %v1156
        %v1158 = vpop.xlane.xlu0 %1157
        %v1159 = vmul.f32 %v1149, 0.125
        %v1160 = vmul.f32 %v1152, 0.125
        %v1161 = vmul.f32 %v1155, 0.125
        %v1162 = vmul.f32 %v1158, 0.125
        %v1163 = vmul.f32 %v1159, %v355
        %v1164 = vmul.f32 %v1160, %v358
        %v1165 = vmul.f32 %v1161, %v361
        %v1166 = vmul.f32 %v1162, %v364
        %v1167 = vadd.f32 %v1163, %v304
        %v1168 = vadd.f32 %v1164, %v305
        %v1169 = vadd.f32 %v1165, %v306
        %v1170 = vadd.f32 %v1166, %v307
        %1171 = vmatpush.msra.mxu0 0.0
        %1172 = vmatpush.msra.mxu0 0.0
        %1173 = vmatpush.msra.mxu0 0.0
        %1174 = vmatpush.msra.mxu0 0.0
        %1175 = vmatpush.msra.mxu0 0.0
        %1176 = vmatpush.msra.mxu0 0.0
        %1177 = vmatpush.msra.mxu0 0.0
        %1178 = vmatpush.msra.mxu0 0.0
        %1179 = vmatpush.msra.mxu0 0.0
        %1180 = vmatpush.msra.mxu0 0.0
        %1181 = vmatpush.msra.mxu0 0.0
        %1182 = vmatpush.msra.mxu0 0.0
        %1183 = vmatpush.msra.mxu0 %v1170
        %1184 = vmatpush.msra.mxu0 %v1169
        %1185 = vmatpush.msra.mxu0 %v1168
        %1186 = vmatpush.msra.mxu0 %v1167
        %1187 = vmatmul.f32.gmra.mxu0 %v447
        %v1188 = vpop.f32.mrf.mxu0
        %v1189 = vadd.f32 0.0, %v1188
        %1190 = vmatmul.f32.gmra.mxu0 %v450
        %v1191 = vpop.f32.mrf.mxu0
        %v1192 = vadd.f32 0.0, %v1191
        %1193 = vmatmul.f32.gmra.mxu0 %v453
        %v1194 = vpop.f32.mrf.mxu0
        %v1195 = vadd.f32 0.0, %v1194
        %1196 = vmatmul.f32.gmra.mxu0 %v456
        %v1197 = vpop.f32.mrf.mxu0
        %v1198 = vadd.f32 0.0, %v1197
        %1199 = vdwg.mxu0
        %1200 = vadd.xlane.f32.xlu0 %v1189
        %v1201 = vpop.xlane.xlu0 %1200
        %1202 = vadd.xlane.f32.xlu0 %v1192
        %v1203 = vpop.xlane.xlu0 %1202
        %1204 = vadd.xlane.f32.xlu0 %v1195
        %v1205 = vpop.xlane.xlu0 %1204
        %1206 = vadd.xlane.f32.xlu0 %v1198
        %v1207 = vpop.xlane.xlu0 %1206
        %v1208 = vmul.f32 %v1201, 0.0009765625
        %v1209 = vmul.f32 %v1203, 0.0009765625
        %v1210 = vmul.f32 %v1205, 0.0009765625
        %v1211 = vmul.f32 %v1207, 0.0009765625
        %v1212 = vsub.f32 %v1167, %v1208
        %v1213 = vsub.f32 %v1168, %v1209
        %v1214 = vsub.f32 %v1169, %v1210
        %v1215 = vsub.f32 %v1170, %v1211
        %v1216 = vmul.f32 %v1212, %v1212
        %v1217 = vmul.f32 %v1213, %v1213
        %v1218 = vmul.f32 %v1214, %v1214
        %v1219 = vmul.f32 %v1215, %v1215
        %1220 = vmatpush.msra.mxu0 0.0
        %1221 = vmatpush.msra.mxu0 0.0
        %1222 = vmatpush.msra.mxu0 0.0
        %1223 = vmatpush.msra.mxu0 0.0
        %1224 = vmatpush.msra.mxu0 0.0
        %1225 = vmatpush.msra.mxu0 0.0
        %1226 = vmatpush.msra.mxu0 0.0
        %1227 = vmatpush.msra.mxu0 0.0
        %1228 = vmatpush.msra.mxu0 0.0
        %1229 = vmatpush.msra.mxu0 0.0
        %1230 = vmatpush.msra.mxu0 0.0
        %1231 = vmatpush.msra.mxu0 0.0
        %1232 = vmatpush.msra.mxu0 %v1219
        %1233 = vmatpush.msra.mxu0 %v1218
        %1234 = vmatpush.msra.mxu0 %v1217
        %1235 = vmatpush.msra.mxu0 %v1216
        %1236 = vmatmul.f32.gmra.mxu0 %v447
        %v1237 = vpop.f32.mrf.mxu0
        %v1238 = vadd.f32 0.0, %v1237
        %1239 = vmatmul.f32.gmra.mxu0 %v450
        %v1240 = vpop.f32.mrf.mxu0
        %v1241 = vadd.f32 0.0, %v1240
        %1242 = vmatmul.f32.gmra.mxu0 %v453
        %v1243 = vpop.f32.mrf.mxu0
        %v1244 = vadd.f32 0.0, %v1243
        %1245 = vmatmul.f32.gmra.mxu0 %v456
        %v1246 = vpop.f32.mrf.mxu0
        %v1247 = vadd.f32 0.0, %v1246
        %1248 = vdwg.mxu0
        %1249 = vadd.xlane.f32.xlu0 %v1238
        %v1250 = vpop.xlane.xlu0 %1249
        %1251 = vadd.xlane.f32.xlu0 %v1241
        %v1252 = vpop.xlane.xlu0 %1251
        %1253 = vadd.xlane.f32.xlu0 %v1244
        %v1254 = vpop.xlane.xlu0 %1253
        %1255 = vadd.xlane.f32.xlu0 %v1247
        %v1256 = vpop.xlane.xlu0 %1255
        %v1257 = vmul.f32 %v1250, 0.0009765625
        %v1258 = vmul.f32 %v1252, 0.0009765625
        %v1259 = vmul.f32 %v1254, 0.0009765625
        %v1260 = vmul.f32 %v1256, 0.0009765625
        %v1261 = vadd.f32 %v1257, 1e-05
        %v1262 = vadd.f32 %v1258, 1e-05
        %v1263 = vadd.f32 %v1259, 1e-05
        %v1264 = vadd.f32 %v1260, 1e-05
        %v1265 = vrsqrt.pop %v1261
        %v1266 = vmul.f32 %v1265, %v1261
        %v1267 = vmul.f32 %v1266, %v1265
        %v1268 = vmul.f32 0.5, %v1267
        %v1269 = vsub.f32 1.5, %v1268
        %v1270 = vmul.f32 %v1265, %v1269
        %vm1271 = vweird.f32 %v1261
        %vm1272 = vweird.f32 %v1265
        %vm1273 = vmor %vm1271, %vm1272
        %v1274 = vsel %vm1273, %v1265, %v1270
        %v1275 = vrsqrt.pop %v1262
        %v1276 = vmul.f32 %v1275, %v1262
        %v1277 = vmul.f32 %v1276, %v1275
        %v1278 = vmul.f32 0.5, %v1277
        %v1279 = vsub.f32 1.5, %v1278
        %v1280 = vmul.f32 %v1275, %v1279
        %vm1281 = vweird.f32 %v1262
        %vm1282 = vweird.f32 %v1275
        %vm1283 = vmor %vm1281, %vm1282
        %v1284 = vsel %vm1283, %v1275, %v1280
        %v1285 = vrsqrt.pop %v1263
        %v1286 = vmul.f32 %v1285, %v1263
        %v1287 = vmul.f32 %v1286, %v1285
        %v1288 = vmul.f32 0.5, %v1287
        %v1289 = vsub.f32 1.5, %v1288
        %v1290 = vmul.f32 %v1285, %v1289
        %vm1291 = vweird.f32 %v1263
        %vm1292 = vweird.f32 %v1285
        %vm1293 = vmor %vm1291, %vm1292
        %v1294 = vsel %vm1293, %v1285, %v1290
        %v1295 = vrsqrt.pop %v1264
        %v1296 = vmul.f32 %v1295, %v1264
        %v1297 = vmul.f32 %v1296, %v1295
        %v1298 = vmul.f32 0.5, %v1297
        %v1299 = vsub.f32 1.5, %v1298
        %v1300 = vmul.f32 %v1295, %v1299
        %vm1301 = vweird.f32 %v1264
        %vm1302 = vweird.f32 %v1295
        %vm1303 = vmor %vm1301, %vm1302
        %v1304 = vsel %vm1303, %v1295, %v1300
        %v1305 = vmul.f32 %v1212, %v1274
        %v1306 = vmul.f32 %v1213, %v1284
        %v1307 = vmul.f32 %v1214, %v1294
        %v1308 = vmul.f32 %v1215, %v1304
        %1310 = vset.pattern.permute.xlu0 0
        %1311 = vperm.xlu0 %1310, %v316
        %v1312 = vpop.permute.xlu0 %1311
        %1315 = vset.pattern.permute.xlu0 0
        %1316 = vperm.xlu0 %1315, %v317
        %v1317 = vpop.permute.xlu0 %1316
        %1320 = vset.pattern.permute.xlu0 0
        %1321 = vperm.xlu0 %1320, %v318
        %v1322 = vpop.permute.xlu0 %1321
        %1325 = vset.pattern.permute.xlu0 0
        %1326 = vperm.xlu0 %1325, %v319
        %v1327 = vpop.permute.xlu0 %1326
        %v1329 = vmul.f32 %v1305, %v1312
        %v1330 = vmul.f32 %v1306, %v1317
        %v1331 = vmul.f32 %v1307, %v1322
        %v1332 = vmul.f32 %v1308, %v1327
        %1334 = vset.pattern.permute.xlu0 0
        %1335 = vperm.xlu0 %1334, %v320
        %v1336 = vpop.permute.xlu0 %1335
        %1339 = vset.pattern.permute.xlu0 0
        %1340 = vperm.xlu0 %1339, %v321
        %v1341 = vpop.permute.xlu0 %1340
        %1344 = vset.pattern.permute.xlu0 0
        %1345 = vperm.xlu0 %1344, %v322
        %v1346 = vpop.permute.xlu0 %1345
        %1349 = vset.pattern.permute.xlu0 0
        %1350 = vperm.xlu0 %1349, %v323
        %v1351 = vpop.permute.xlu0 %1350
        %v1353 = vadd.f32 %v1329, %v1336
        %v1354 = vadd.f32 %v1330, %v1341
        %v1355 = vadd.f32 %v1331, %v1346
        %v1356 = vadd.f32 %v1332, %v1351
        %1357 = vst [vmem:[%s303] sm:$0xff] %v1353
        %1358 = vst [vmem:[%s303 + $0x8] sm:$0xff] %v1354
        %1359 = vst [vmem:[%s303 + $0x10] sm:$0xff] %v1355
        %1360 = vst [vmem:[%s303 + $0x18] sm:$0xff] %v1356
        %s1361 = sand.u32 %s139, 1
        %s1362 = scalar_lea.sflag [#allocation5], %s1361
        %s1363 = sand.u32 %s139, 1
        %s1364 = smul.addr %s1363, 32
        %s1365 = scalar_lea.vmem [#allocation8], %s1364
        // Predicated region
        $region87: #{tpu_custom_call.1} parent=73 // pred_check
          %p1366 = pneg %p149
        $region88: #{tpu_custom_call.1} parent=73 // pred_check_branch
          %1368 = sbr.rel (%p1366) target = $region90
        $region89: #{tpu_custom_call.1} parent=73 // pred_region
          %1370 = vsyncadd %s1362, 0
          %s1371 = smul.addr %s21, 8
          %s1372 = scalar_lea.hbm %s5, %s1371
          %s1373 = sshll.u32 %s1365, 4
          %s1374 = int_to_ptr.vmem [resolvable:$true] %s1373
          %s1375 = sshll.u32 %s1372, 4
          %s1376 = int_to_ptr.hbm [resolvable:$true] %s1375
          %1381 = dma.vmem_to_hbm [thread:$0]  %s1374, 512, %s1376, %s1362, 128, 256, 8
        $region90: #{tpu_custom_call.1} parent=73 // pred_fallthru
          _
      $region74: #{tpu_custom_call.1} parent=5 // pred_fallthru
        _
      %p1382 = scmp.le.s32.totalorder 2, %s16
      // Predicated region
      $region91: #{tpu_custom_call.1} parent=5 // pred_check
        %p1383 = pneg %p1382
      $region92: #{tpu_custom_call.1} parent=5 // pred_check_branch
        %1385 = sbr.rel (%p1383) target = $region94
      $region93: #{tpu_custom_call.1} parent=5 // pred_region
        %s1386 = ssub.s32 %s16, 2
        // Predicated region
        $region95: #{tpu_custom_call.1} parent=93 // pred_check
          %p1387 = pneg %p155
        $region96: #{tpu_custom_call.1} parent=93 // pred_check_branch
          %1389 = sbr.rel (%p1387) target = $region98
        $region97: #{tpu_custom_call.1} parent=93 // pred_region
          %s1390 = sand.u32 %s140, 1
          %s1391 = scalar_lea.sflag [#allocation5], %s1390
          %s1392 = sand.u32 %s140, 1
          %s1393 = smul.addr %s1392, 32
          %s1394 = scalar_lea.vmem [#allocation8], %s1393
          %1396 = dma.done %s1391, 512
        $region98: #{tpu_custom_call.1} parent=93 // pred_fallthru
          _
      $region94: #{tpu_custom_call.1} parent=5 // pred_fallthru
        _
    $region6: #{tpu_custom_call.1} parent=1 // loop_footer
      %s20 = sadd.s32 1, %s16
    $region7: #{tpu_custom_call.1} parent=1 // loop_footer_branch
      %15 = sbr.rel target = $region3
    $region8: #{tpu_custom_call.1} parent=1 // loop_exit
      _
    %1397 = vsyncpa [#allocation4], 1
    %s1398 = scalar_lea.sflag [#allocation4], 1
    %1399 = vsyncpa %s1398, 1
    %1400 = vsyncpa [#allocation7], 1
    %1401 = vsyncpa [#allocation5], 1
    %s1402 = scalar_lea.sflag [#allocation5], 1
    %1403 = vsyncpa %s1402, 1

</llo_original>
